<compile_context>
chip_gen: v5e
topology: v5e:2x2
jax: 0.10.0
libtpu: 0.0.40
codegen_flags: <defaults>
</compile_context>

<pallas_src>
import functools

import numpy as np
import jax
import jax.numpy as jnp
from jax.experimental import pallas as pl
from jax.experimental.pallas import tpu as pltpu

# ---- fixed module configuration ---------------------------------------------
N_FFT = 64
HOP = N_FFT // 4            # 16
N_FREQ = N_FFT // 2 + 1     # 33 (one-sided)
NORMS = ("L1", "L2")

LANES = 128                 # padded DFT output width (re in [0:33], im in [64:97])
PEEK = 8                    # extra hop rows per tile (>= n_fft/hop - 1 = 3, mult of 8)


# ---- offline constants --------------------------------------------------------
def _windowed_dft_matrix():
    """[n_fft, 128]: cols [0:33] = hann*cos, cols [64:97] = -hann*sin, rest zero."""
    n = np.arange(N_FFT)
    win = 0.5 - 0.5 * np.cos(2.0 * np.pi * n / N_FFT)        # periodic Hann
    k = np.arange(N_FREQ)
    ang = 2.0 * np.pi * np.outer(n, k) / N_FFT
    w = np.zeros((N_FFT, LANES), np.float32)
    w[:, :N_FREQ] = np.cos(ang) * win[:, None]
    w[:, 64:64 + N_FREQ] = -np.sin(ang) * win[:, None]
    return jnp.asarray(w)


# ---- Pallas kernel ------------------------------------------------------------
def _spectral_tile_kernel(xm_ref, xp_ref, ym_ref, yp_ref, w_ref, out_ref,
                          *, tile_f, n_frames):
    t = pl.program_id(1)
    w = w_ref[...]                                            # [64, 128], resident

    def spec_out(main_ref, peek_ref):
        # hop blocks for this tile (+8 peek rows from the next tile)
        rows = jnp.concatenate([main_ref[0], peek_ref[0]], axis=0)   # [tile_f+8, 16]
        # frame f = hop rows f..f+3 -> 4 shifted K=16 MXU matmuls, summed
        out = jnp.dot(rows[0:tile_f], w[0:HOP],
                      preferred_element_type=jnp.float32)
        for r in range(1, N_FFT // HOP):
            out = out + jnp.dot(rows[r:r + tile_f],
                                w[r * HOP:(r + 1) * HOP],
                                preferred_element_type=jnp.float32)
        return out                                            # [tile_f, 128]

    ox = spec_out(xm_ref, xp_ref)
    oy = spec_out(ym_ref, yp_ref)

    # |STFT|^2 difference: square at full lane width, then fold re^2 + im^2
    d = oy * oy - ox * ox                                     # [tile_f, 128]
    diff = d[:, :64] + d[:, 64:]                              # spec(y)-spec(x), [tile_f, 64]

    # mask frames beyond the true frame count (zero-padded audio tail)
    local = jax.lax.broadcasted_iota(jnp.int32, (tile_f, 1), 0)
    valid = (t * tile_f + local) < n_frames
    diff = jnp.where(valid, diff, 0.0)

    l1 = jnp.sum(jnp.abs(diff))                               # partial L1 sum
    l2 = jnp.sum(diff * diff)                                 # partial L2 sum

    # lane-dense [8,128] partial-sum block: [0,0]=L1 sum, [0,1]=L2 sum, rest 0
    sub = jax.lax.broadcasted_iota(jnp.int32, (8, LANES), 0)
    lane = jax.lax.broadcasted_iota(jnp.int32, (8, LANES), 1)
    res = jnp.where((sub == 0) & (lane == 0), l1, 0.0)
    res = jnp.where((sub == 0) & (lane == 1), l2, res)
    out_ref[0, 0] = res


# ---- host-side glue -----------------------------------------------------------
def _hop_blocks(x, n_hops_pad):
    """[B, T] -> zero-padded hop blocks [B, n_hops_pad, HOP] (free reshape + tiny pad)."""
    B, T = x.shape
    total = n_hops_pad * HOP
    x = jnp.pad(x, ((0, 0), (0, total - T)))
    return x.reshape(B, n_hops_pad, HOP)


def spectral_distance(x, y, *, tile_f=128):
    """Equivalent of SpectralDistance(64, 16000, ("L1","L2"), 2, False)(x, y)."""
    x = x.astype(jnp.float32)
    y = y.astype(jnp.float32)
    B, T = x.shape
    assert T >= N_FFT, "need at least one STFT frame"
    assert tile_f % PEEK == 0

    n_frames = (T - N_FFT) // HOP + 1                         # center=False frame count
    n_tiles = (n_frames + tile_f - 1) // tile_f
    n_hops_pad = n_tiles * tile_f + PEEK                      # always >= ceil(T/HOP)

    hx = _hop_blocks(x, n_hops_pad)
    hy = _hop_blocks(y, n_hops_pad)
    w = _windowed_dft_matrix()

    kernel = functools.partial(_spectral_tile_kernel, tile_f=tile_f, n_frames=n_frames)

    main_spec = pl.BlockSpec((1, tile_f, HOP), lambda b, t: (b, t, 0))
    peek_spec = pl.BlockSpec((1, PEEK, HOP),
                             lambda b, t: (b, (t + 1) * (tile_f // PEEK), 0))
    w_spec = pl.BlockSpec((N_FFT, LANES), lambda b, t: (0, 0))

    partials = pl.pallas_call(
        kernel,
        out_shape=jax.ShapeDtypeStruct((B, n_tiles, 8, LANES), jnp.float32),
        grid=(B, n_tiles),
        in_specs=[main_spec, peek_spec, main_spec, peek_spec, w_spec],
        out_specs=pl.BlockSpec((1, 1, 8, LANES), lambda b, t: (b, t, 0, 0)),
        compiler_params=pltpu.CompilerParams(
            dimension_semantics=("parallel", "parallel"),
            vmem_limit_bytes=32 * 1024 * 1024),
    )(hx, hx, hy, hy, w)

    l1_sum = jnp.sum(partials[:, :, 0, 0])
    l2_sum = jnp.sum(partials[:, :, 0, 1])
    count = jnp.float32(B * n_frames * N_FREQ)                # true element count

    dist = jnp.float32(0.0)
    for norm in NORMS:                                        # unrolled at trace time
        if norm == "L1":
            dist = dist + l1_sum / count
        elif norm == "L2":
            dist = dist + l2_sum / count
    return dist


# ---- pure-JAX reference (sanity check) ----------------------------------------
def _reference(x, y):
    x = x.astype(jnp.float32)
    y = y.astype(jnp.float32)
    B, T = x.shape
    n_frames = (T - N_FFT) // HOP + 1
    idx = jnp.arange(n_frames)[:, None] * HOP + jnp.arange(N_FFT)[None, :]

    n = np.arange(N_FFT)
    win = jnp.asarray((0.5 - 0.5 * np.cos(2.0 * np.pi * n / N_FFT)).astype(np.float32))
    k = np.arange(N_FREQ)
    ang = 2.0 * np.pi * np.outer(n, k) / N_FFT
    cos_m = jnp.asarray(np.cos(ang).astype(np.float32))
    sin_m = jnp.asarray((-np.sin(ang)).astype(np.float32))
    hi = jax.lax.Precision.HIGHEST

    def spec(sig):
        fr = sig[:, idx] * win                                # [B, n_frames, 64]
        re = jnp.matmul(fr, cos_m, precision=hi)
        im = jnp.matmul(fr, sin_m, precision=hi)
        return re * re + im * im                              # [B, n_frames, 33]

    diff = spec(y) - spec(x)
    dist = 0.0
    for norm in NORMS:
        if norm == "L1":
            dist = dist + jnp.mean(jnp.abs(diff))
        elif norm == "L2":
            dist = dist + jnp.mean(diff * diff)
    return dist


if __name__ == "__main__":
    key = jax.random.PRNGKey(0)
    kx, ky = jax.random.split(key)
    B, T = 2, 4096                                            # n_frames = 253, 2 tiles
    x = jax.random.normal(kx, (B, T), dtype=jnp.float32)
    y = jax.random.normal(ky, (B, T), dtype=jnp.float32)

    dist = jax.jit(spectral_distance)(x, y)
    dist = jax.block_until_ready(dist)

    ref = np.asarray(_reference(x, y))
    got = np.asarray(dist)
    if not np.allclose(got, ref, rtol=2e-2, atol=1e-2):
        raise AssertionError(f"mismatch: kernel={got} ref={ref}")

    print("KERNEL_OK")
</pallas_src>

<mosaic_0001>
module attributes {stable_mosaic.version = 11 : i64} {
  func.func @_spectral_tile_kernel(%arg0: i32, %arg1: i32, %arg2: memref<1x128x16xf32, #tpu.memory_space<vmem>>, %arg3: memref<1x8x16xf32, #tpu.memory_space<vmem>>, %arg4: memref<1x128x16xf32, #tpu.memory_space<vmem>>, %arg5: memref<1x8x16xf32, #tpu.memory_space<vmem>>, %arg6: memref<64x128xf32, #tpu.memory_space<vmem>>, %arg7: memref<1x1x8x128xf32, #tpu.memory_space<vmem>>) attributes {dimension_semantics = [#tpu.dimension_semantics<parallel>, #tpu.dimension_semantics<parallel>], iteration_bounds = array<i64: 2, 2>, scalar_prefetch = 0 : i64, scratch_operands = 0 : i64, tpu.core_type = #tpu.core_type<tc>, window_params = [{transform_indices = @transform_0, window_bounds = array<i64: 1, 128, 16>}, {transform_indices = @transform_1, window_bounds = array<i64: 1, 8, 16>}, {transform_indices = @transform_2, window_bounds = array<i64: 1, 128, 16>}, {transform_indices = @transform_3, window_bounds = array<i64: 1, 8, 16>}, {pipeline_mode = #tpu.pipeline_mode<synchronous>, transform_indices = @transform_4, window_bounds = array<i64: 64, 128>}, {transform_indices = @transform_5, window_bounds = array<i64: 1, 1, 8, 128>}]} {
    %c0 = arith.constant 0 : index
    %c0_0 = arith.constant 0 : index
    %0 = vector.load %arg6[%c0, %c0_0] : memref<64x128xf32, #tpu.memory_space<vmem>>, vector<64x128xf32>
    %c0_1 = arith.constant 0 : index
    %c0_2 = arith.constant 0 : index
    %c0_3 = arith.constant 0 : index
    %1 = vector.load %arg2[%c0_1, %c0_2, %c0_3] : memref<1x128x16xf32, #tpu.memory_space<vmem>>, vector<1x128x16xf32>
    %2 = vector.shape_cast %1 : vector<1x128x16xf32> to vector<128x16xf32>
    %c0_4 = arith.constant 0 : index
    %c0_5 = arith.constant 0 : index
    %c0_6 = arith.constant 0 : index
    %3 = vector.load %arg3[%c0_4, %c0_5, %c0_6] : memref<1x8x16xf32, #tpu.memory_space<vmem>>, vector<1x8x16xf32>
    %4 = vector.shape_cast %3 : vector<1x8x16xf32> to vector<8x16xf32>
    %5 = tpu.concatenate %2, %4 in 0 : vector<128x16xf32>, vector<8x16xf32> -> vector<136x16xf32>
    %6 = vector.extract_strided_slice %5 {offsets = [0, 0], sizes = [128, 16], strides = [1, 1]} : vector<136x16xf32> to vector<128x16xf32>
    %7 = vector.extract_strided_slice %0 {offsets = [0, 0], sizes = [16, 128], strides = [1, 1]} : vector<64x128xf32> to vector<16x128xf32>
    %cst = arith.constant dense<0.000000e+00> : vector<128x128xf32>
    %8 = tpu.matmul %6, %7, %cst {dimension_numbers = #tpu.dot_dimension_numbers<[1], [0], [0], [1], [0, 0, 1, 1], [], []>} : vector<128x16xf32>, vector<16x128xf32>, vector<128x128xf32> -> vector<128x128xf32>
    %9 = vector.extract_strided_slice %5 {offsets = [1, 0], sizes = [128, 16], strides = [1, 1]} : vector<136x16xf32> to vector<128x16xf32>
    %10 = vector.extract_strided_slice %0 {offsets = [16, 0], sizes = [16, 128], strides = [1, 1]} : vector<64x128xf32> to vector<16x128xf32>
    %cst_7 = arith.constant dense<0.000000e+00> : vector<128x128xf32>
    %11 = tpu.matmul %9, %10, %cst_7 {dimension_numbers = #tpu.dot_dimension_numbers<[1], [0], [0], [1], [0, 0, 1, 1], [], []>} : vector<128x16xf32>, vector<16x128xf32>, vector<128x128xf32> -> vector<128x128xf32>
    %12 = arith.addf %8, %11 : vector<128x128xf32>
    %13 = vector.extract_strided_slice %5 {offsets = [2, 0], sizes = [128, 16], strides = [1, 1]} : vector<136x16xf32> to vector<128x16xf32>
    %14 = vector.extract_strided_slice %0 {offsets = [32, 0], sizes = [16, 128], strides = [1, 1]} : vector<64x128xf32> to vector<16x128xf32>
    %cst_8 = arith.constant dense<0.000000e+00> : vector<128x128xf32>
    %15 = tpu.matmul %13, %14, %cst_8 {dimension_numbers = #tpu.dot_dimension_numbers<[1], [0], [0], [1], [0, 0, 1, 1], [], []>} : vector<128x16xf32>, vector<16x128xf32>, vector<128x128xf32> -> vector<128x128xf32>
    %16 = arith.addf %12, %15 : vector<128x128xf32>
    %17 = vector.extract_strided_slice %5 {offsets = [3, 0], sizes = [128, 16], strides = [1, 1]} : vector<136x16xf32> to vector<128x16xf32>
    %18 = vector.extract_strided_slice %0 {offsets = [48, 0], sizes = [16, 128], strides = [1, 1]} : vector<64x128xf32> to vector<16x128xf32>
    %cst_9 = arith.constant dense<0.000000e+00> : vector<128x128xf32>
    %19 = tpu.matmul %17, %18, %cst_9 {dimension_numbers = #tpu.dot_dimension_numbers<[1], [0], [0], [1], [0, 0, 1, 1], [], []>} : vector<128x16xf32>, vector<16x128xf32>, vector<128x128xf32> -> vector<128x128xf32>
    %20 = arith.addf %16, %19 : vector<128x128xf32>
    %c0_10 = arith.constant 0 : index
    %c0_11 = arith.constant 0 : index
    %c0_12 = arith.constant 0 : index
    %21 = vector.load %arg4[%c0_10, %c0_11, %c0_12] : memref<1x128x16xf32, #tpu.memory_space<vmem>>, vector<1x128x16xf32>
    %22 = vector.shape_cast %21 : vector<1x128x16xf32> to vector<128x16xf32>
    %c0_13 = arith.constant 0 : index
    %c0_14 = arith.constant 0 : index
    %c0_15 = arith.constant 0 : index
    %23 = vector.load %arg5[%c0_13, %c0_14, %c0_15] : memref<1x8x16xf32, #tpu.memory_space<vmem>>, vector<1x8x16xf32>
    %24 = vector.shape_cast %23 : vector<1x8x16xf32> to vector<8x16xf32>
    %25 = tpu.concatenate %22, %24 in 0 : vector<128x16xf32>, vector<8x16xf32> -> vector<136x16xf32>
    %26 = vector.extract_strided_slice %25 {offsets = [0, 0], sizes = [128, 16], strides = [1, 1]} : vector<136x16xf32> to vector<128x16xf32>
    %27 = vector.extract_strided_slice %0 {offsets = [0, 0], sizes = [16, 128], strides = [1, 1]} : vector<64x128xf32> to vector<16x128xf32>
    %cst_16 = arith.constant dense<0.000000e+00> : vector<128x128xf32>
    %28 = tpu.matmul %26, %27, %cst_16 {dimension_numbers = #tpu.dot_dimension_numbers<[1], [0], [0], [1], [0, 0, 1, 1], [], []>} : vector<128x16xf32>, vector<16x128xf32>, vector<128x128xf32> -> vector<128x128xf32>
    %29 = vector.extract_strided_slice %25 {offsets = [1, 0], sizes = [128, 16], strides = [1, 1]} : vector<136x16xf32> to vector<128x16xf32>
    %30 = vector.extract_strided_slice %0 {offsets = [16, 0], sizes = [16, 128], strides = [1, 1]} : vector<64x128xf32> to vector<16x128xf32>
    %cst_17 = arith.constant dense<0.000000e+00> : vector<128x128xf32>
    %31 = tpu.matmul %29, %30, %cst_17 {dimension_numbers = #tpu.dot_dimension_numbers<[1], [0], [0], [1], [0, 0, 1, 1], [], []>} : vector<128x16xf32>, vector<16x128xf32>, vector<128x128xf32> -> vector<128x128xf32>
    %32 = arith.addf %28, %31 : vector<128x128xf32>
    %33 = vector.extract_strided_slice %25 {offsets = [2, 0], sizes = [128, 16], strides = [1, 1]} : vector<136x16xf32> to vector<128x16xf32>
    %34 = vector.extract_strided_slice %0 {offsets = [32, 0], sizes = [16, 128], strides = [1, 1]} : vector<64x128xf32> to vector<16x128xf32>
    %cst_18 = arith.constant dense<0.000000e+00> : vector<128x128xf32>
    %35 = tpu.matmul %33, %34, %cst_18 {dimension_numbers = #tpu.dot_dimension_numbers<[1], [0], [0], [1], [0, 0, 1, 1], [], []>} : vector<128x16xf32>, vector<16x128xf32>, vector<128x128xf32> -> vector<128x128xf32>
    %36 = arith.addf %32, %35 : vector<128x128xf32>
    %37 = vector.extract_strided_slice %25 {offsets = [3, 0], sizes = [128, 16], strides = [1, 1]} : vector<136x16xf32> to vector<128x16xf32>
    %38 = vector.extract_strided_slice %0 {offsets = [48, 0], sizes = [16, 128], strides = [1, 1]} : vector<64x128xf32> to vector<16x128xf32>
    %cst_19 = arith.constant dense<0.000000e+00> : vector<128x128xf32>
    %39 = tpu.matmul %37, %38, %cst_19 {dimension_numbers = #tpu.dot_dimension_numbers<[1], [0], [0], [1], [0, 0, 1, 1], [], []>} : vector<128x16xf32>, vector<16x128xf32>, vector<128x128xf32> -> vector<128x128xf32>
    %40 = arith.addf %36, %39 : vector<128x128xf32>
    %41 = arith.mulf %40, %40 : vector<128x128xf32>
    %42 = arith.mulf %20, %20 : vector<128x128xf32>
    %43 = arith.subf %41, %42 : vector<128x128xf32>
    %44 = vector.extract_strided_slice %43 {offsets = [0, 0], sizes = [128, 64], strides = [1, 1]} : vector<128x128xf32> to vector<128x64xf32>
    %45 = vector.extract_strided_slice %43 {offsets = [0, 64], sizes = [128, 64], strides = [1, 1]} : vector<128x128xf32> to vector<128x64xf32>
    %46 = arith.addf %44, %45 : vector<128x64xf32>
    %47 = tpu.iota {dimensions = array<i32: 0>} : vector<128x1xi32>
    %c128_i32 = arith.constant 128 : i32
    %48 = arith.muli %arg1, %c128_i32 : i32
    %49 = vector.broadcast %48 : i32 to vector<128x1xi32>
    %50 = arith.addi %49, %47 : vector<128x1xi32>
    %c253_i32 = arith.constant 253 : i32
    %51 = vector.broadcast %c253_i32 : i32 to vector<128x1xi32>
    %52 = arith.cmpi slt, %50, %51 : vector<128x1xi32>
    %cst_20 = arith.constant 0.000000e+00 : f32
    %53 = vector.shape_cast %52 : vector<128x1xi1> to vector<128x1xi1>
    %54 = vector.broadcast %53 : vector<128x1xi1> to vector<128x64xi1>
    %55 = vector.broadcast %cst_20 : f32 to vector<128x64xf32>
    %56 = arith.select %54, %46, %55 : vector<128x64xi1>, vector<128x64xf32>
    %57 = math.absf %56 : vector<128x64xf32>
    %58 = vector.shape_cast %57 : vector<128x64xf32> to vector<1x128x64xf32>
    %cst_21 = arith.constant dense<0.000000e+00> : vector<1xf32>
    %59 = vector.multi_reduction <add>, %58, %cst_21 [1, 2] : vector<1x128x64xf32> to vector<1xf32>
    %60 = vector.shape_cast %59 : vector<1xf32> to vector<1x1x1xf32>
    %61 = vector.extract %60[0, 0, 0] : f32 from vector<1x1x1xf32>
    %62 = arith.mulf %56, %56 : vector<128x64xf32>
    %63 = vector.shape_cast %62 : vector<128x64xf32> to vector<1x128x64xf32>
    %cst_22 = arith.constant dense<0.000000e+00> : vector<1xf32>
    %64 = vector.multi_reduction <add>, %63, %cst_22 [1, 2] : vector<1x128x64xf32> to vector<1xf32>
    %65 = vector.shape_cast %64 : vector<1xf32> to vector<1x1x1xf32>
    %66 = vector.extract %65[0, 0, 0] : f32 from vector<1x1x1xf32>
    %67 = tpu.iota {dimensions = array<i32: 0>} : vector<8x128xi32>
    %68 = tpu.iota {dimensions = array<i32: 1>} : vector<8x128xi32>
    %c0_i32 = arith.constant 0 : i32
    %69 = vector.broadcast %c0_i32 : i32 to vector<8x128xi32>
    %70 = arith.cmpi eq, %67, %69 : vector<8x128xi32>
    %c0_i32_23 = arith.constant 0 : i32
    %71 = vector.broadcast %c0_i32_23 : i32 to vector<8x128xi32>
    %72 = arith.cmpi eq, %68, %71 : vector<8x128xi32>
    %73 = arith.andi %70, %72 : vector<8x128xi1>
    %cst_24 = arith.constant 0.000000e+00 : f32
    %74 = vector.broadcast %61 : f32 to vector<8x128xf32>
    %75 = vector.broadcast %cst_24 : f32 to vector<8x128xf32>
    %76 = arith.select %73, %74, %75 : vector<8x128xi1>, vector<8x128xf32>
    %c0_i32_25 = arith.constant 0 : i32
    %77 = vector.broadcast %c0_i32_25 : i32 to vector<8x128xi32>
    %78 = arith.cmpi eq, %67, %77 : vector<8x128xi32>
    %c1_i32 = arith.constant 1 : i32
    %79 = vector.broadcast %c1_i32 : i32 to vector<8x128xi32>
    %80 = arith.cmpi eq, %68, %79 : vector<8x128xi32>
    %81 = arith.andi %78, %80 : vector<8x128xi1>
    %82 = vector.broadcast %66 : f32 to vector<8x128xf32>
    %83 = arith.select %81, %82, %76 : vector<8x128xi1>, vector<8x128xf32>
    %c0_26 = arith.constant 0 : index
    %c0_27 = arith.constant 0 : index
    %c0_28 = arith.constant 0 : index
    %c0_29 = arith.constant 0 : index
    %84 = vector.load %arg7[%c0_26, %c0_27, %c0_28, %c0_29] : memref<1x1x8x128xf32, #tpu.memory_space<vmem>>, vector<1x1x8x128xf32>
    %85 = vector.shape_cast %84 : vector<1x1x8x128xf32> to vector<8x128xf32>
    %86 = vector.shape_cast %83 : vector<8x128xf32> to vector<1x1x8x128xf32>
    tpu.vector_store %arg7[%c0_26, %c0_27, %c0_28, %c0_29], %86 {strides = array<i32>} : memref<1x1x8x128xf32, #tpu.memory_space<vmem>>, vector<1x1x8x128xf32>,
    return
  }
  func.func @transform_0(%arg0: i32, %arg1: i32) -> (i32, i32, i32) {
    %c0_i32 = arith.constant 0 : i32
    %c0_i32_0 = arith.constant 0 : i32
    return %arg0, %arg1, %c0_i32 : i32, i32, i32
  }
  func.func @transform_1(%arg0: i32, %arg1: i32) -> (i32, i32, i32) {
    %c1_i32 = arith.constant 1 : i32
    %0 = arith.addi %arg1, %c1_i32 : i32
    %c16_i32 = arith.constant 16 : i32
    %1 = arith.muli %0, %c16_i32 : i32
    %c0_i32 = arith.constant 0 : i32
    %c0_i32_0 = arith.constant 0 : i32
    return %arg0, %1, %c0_i32 : i32, i32, i32
  }
  func.func @transform_2(%arg0: i32, %arg1: i32) -> (i32, i32, i32) {
    %c0_i32 = arith.constant 0 : i32
    %c0_i32_0 = arith.constant 0 : i32
    return %arg0, %arg1, %c0_i32 : i32, i32, i32
  }
  func.func @transform_3(%arg0: i32, %arg1: i32) -> (i32, i32, i32) {
    %c1_i32 = arith.constant 1 : i32
    %0 = arith.addi %arg1, %c1_i32 : i32
    %c16_i32 = arith.constant 16 : i32
    %1 = arith.muli %0, %c16_i32 : i32
    %c0_i32 = arith.constant 0 : i32
    %c0_i32_0 = arith.constant 0 : i32
    return %arg0, %1, %c0_i32 : i32, i32, i32
  }
  func.func @transform_4(%arg0: i32, %arg1: i32) -> (i32, i32) {
    %c0_i32 = arith.constant 0 : i32
    %c0_i32_0 = arith.constant 0 : i32
    %c0_i32_1 = arith.constant 0 : i32
    return %c0_i32, %c0_i32_0 : i32, i32
  }
  func.func @transform_5(%arg0: i32, %arg1: i32) -> (i32, i32, i32, i32) {
    %c0_i32 = arith.constant 0 : i32
    %c0_i32_0 = arith.constant 0 : i32
    %c0_i32_1 = arith.constant 0 : i32
    return %arg0, %arg1, %c0_i32, %c0_i32_0 : i32, i32, i32, i32
  }
}

</mosaic_0001>

<llo_original>
// kernel: spectral_distance.1
$region0: #{spectral_distance.1}
  #allocation0 [shape = 'u32[]', space=smem, size = 0x4, offset = 0x4, fixed_abs, tag = 'smem constant byte address 0x4 - core index']
  #allocation1 [shape = 'u32[72,128]{1,0:T(1,128)}', space=vmem, size = 0x9000, scoped, tag = 'internal scratch']
  %s0 = inlined_call_operand.vmem [shape: f32[2,264,16], index: 0, kind: input, shape index: {}, may-alias: {0,1}]
  %s1 = inlined_call_operand.vmem [shape: f32[2,264,16], index: 1, kind: input, shape index: {}, may-alias: {0,1}]
  %s2 = inlined_call_operand.vmem [shape: f32[2,264,16], index: 2, kind: input, shape index: {}, may-alias: {2,3}]
  %s3 = inlined_call_operand.vmem [shape: f32[2,264,16], index: 3, kind: input, shape index: {}, may-alias: {2,3}]
  %s4 = inlined_call_operand.vmem [shape: f32[64,128], index: 4, kind: input, shape index: {}]
  %s5 = inlined_call_operand.vmem [shape: f32[2,2,8,128], index: 5, kind: output, shape index: {}]
  %s6 = sld [smem:[#allocation0]]
  $region53: #{spectral_distance.1} parent=0
    _
  %s8 = ssub.s32 1, %s6
  %s9 = scalar_select 0, %s8, %s6
  loop: start=0, step=1, limit=6
  $region2: #{spectral_distance.1} parent=0 // loop_pre_header
    _
  $region3: #{spectral_distance.1} parent=0 // loop_header
    %s11 = sphi 0, %s15
    %p12 = scmp.ge.s32.totalorder %s11, 6
    %s18 = sphi 0, %s30
    %s19 = sphi 0, %s26
    %s20 = sphi 0, %s18
    %s21 = sphi 0, %s19
    %s22 = sphi 0, %s20
    %s23 = sphi 0, %s21
    %s35 = sphi 0, %s37
    %s38 = sphi 0, %s35
    %s39 = sphi 0, %s38
    %s55 = sphi 0, %s39
    %s67 = sphi 0, %s69
    %s70 = sphi 0, %s67
    %s71 = sphi 0, %s70
    %s87 = sphi 0, %s71
    %s95 = sphi 0, %s97
    %s98 = sphi 0, %s95
    %s99 = sphi 0, %s98
    %s115 = sphi 0, %s99
    %s127 = sphi 0, %s129
    %s130 = sphi 0, %s127
    %s131 = sphi 0, %s130
    %s147 = sphi 0, %s131
    %s151 = sphi 0, %s151
    %s153 = sphi 0, %s151
    %s154 = sphi 0, %s153
    %s168 = sphi 0, %s154
    %s176 = sphi 0, %s178
    %s179 = sphi 0, %s176
    %s180 = sphi 0, %s179
    %s196 = sphi 0, %s180
  $region4: #{spectral_distance.1} parent=0 // loop_header_branch
    %14 = sbr.rel (%p12) target = $region8
  $region5: #{spectral_distance.1} parent=0 // loop_body
    %s16 = ssub.s32 %s11, 1
    %s17 = ssub.s32 %s11, 2
    %s24 = sadd.s32 1, %s19
    %p25 = scmp.ge.s32.totalorder %s24, 2
    %s26 = scalar_select %p25, 0, %s24
    %s27 = sadd.s32 1, %s18
    %s28 = scalar_select %p25, %s27, %s18
    %p29 = scmp.ge.s32.totalorder %s28, 2
    %s30 = scalar_select %p29, 0, %s28
    %s31 = ssub.s32 %s18, %s30
    %s32 = ssub.s32 %s19, %s26
    %s33 = sor.u32 %s31, %s32
    %p34 = scmp.eq.s32.totalorder %s33, 0
    %s36 = sadd.s32 %s35, 1
    %s37 = scalar_select %p34, %s35, %s36
    %p40 = pneg %p34
    %p41 = scmp.eq.s32.totalorder %s11, 3
    %p42 = por %p40, %p41
    %p43 = scmp.ne.s32.totalorder %s35, %s38
    %p44 = scmp.eq.s32.totalorder %s11, 0
    %p45 = por %p43, %p44
    %p46 = scmp.ne.s32.totalorder %s35, %s38
    %p47 = scmp.eq.s32.totalorder %s16, 3
    %p48 = por %p46, %p47
    %p49 = scmp.ne.s32.totalorder %s38, %s39
    %p50 = scmp.eq.s32.totalorder %s16, 0
    %p51 = por %p49, %p50
    %p52 = scmp.ne.s32.totalorder %s38, %s39
    %p53 = scmp.eq.s32.totalorder %s17, 3
    %p54 = por %p52, %p53
    %p56 = scmp.ne.s32.totalorder %s39, %s55
    %p57 = scmp.eq.s32.totalorder %s17, 0
    %p58 = por %p56, %p57
    %s59 = sadd.s32 %s19, 1
    %s60 = smul.u32 %s59, 16
    %s61 = sadd.s32 %s26, 1
    %s62 = smul.u32 %s61, 16
    %s63 = ssub.s32 %s18, %s30
    %s64 = ssub.s32 %s60, %s62
    %s65 = sor.u32 %s63, %s64
    %p66 = scmp.eq.s32.totalorder %s65, 0
    %s68 = sadd.s32 %s67, 1
    %s69 = scalar_select %p66, %s67, %s68
    %p72 = pneg %p66
    %p73 = scmp.eq.s32.totalorder %s11, 3
    %p74 = por %p72, %p73
    %p75 = scmp.ne.s32.totalorder %s67, %s70
    %p76 = scmp.eq.s32.totalorder %s11, 0
    %p77 = por %p75, %p76
    %p78 = scmp.ne.s32.totalorder %s67, %s70
    %p79 = scmp.eq.s32.totalorder %s16, 3
    %p80 = por %p78, %p79
    %p81 = scmp.ne.s32.totalorder %s70, %s71
    %p82 = scmp.eq.s32.totalorder %s16, 0
    %p83 = por %p81, %p82
    %p84 = scmp.ne.s32.totalorder %s70, %s71
    %p85 = scmp.eq.s32.totalorder %s17, 3
    %p86 = por %p84, %p85
    %p88 = scmp.ne.s32.totalorder %s71, %s87
    %p89 = scmp.eq.s32.totalorder %s17, 0
    %p90 = por %p88, %p89
    %s91 = ssub.s32 %s18, %s30
    %s92 = ssub.s32 %s19, %s26
    %s93 = sor.u32 %s91, %s92
    %p94 = scmp.eq.s32.totalorder %s93, 0
    %s96 = sadd.s32 %s95, 1
    %s97 = scalar_select %p94, %s95, %s96
    %p100 = pneg %p94
    %p101 = scmp.eq.s32.totalorder %s11, 3
    %p102 = por %p100, %p101
    %p103 = scmp.ne.s32.totalorder %s95, %s98
    %p104 = scmp.eq.s32.totalorder %s11, 0
    %p105 = por %p103, %p104
    %p106 = scmp.ne.s32.totalorder %s95, %s98
    %p107 = scmp.eq.s32.totalorder %s16, 3
    %p108 = por %p106, %p107
    %p109 = scmp.ne.s32.totalorder %s98, %s99
    %p110 = scmp.eq.s32.totalorder %s16, 0
    %p111 = por %p109, %p110
    %p112 = scmp.ne.s32.totalorder %s98, %s99
    %p113 = scmp.eq.s32.totalorder %s17, 3
    %p114 = por %p112, %p113
    %p116 = scmp.ne.s32.totalorder %s99, %s115
    %p117 = scmp.eq.s32.totalorder %s17, 0
    %p118 = por %p116, %p117
    %s119 = sadd.s32 %s19, 1
    %s120 = smul.u32 %s119, 16
    %s121 = sadd.s32 %s26, 1
    %s122 = smul.u32 %s121, 16
    %s123 = ssub.s32 %s18, %s30
    %s124 = ssub.s32 %s120, %s122
    %s125 = sor.u32 %s123, %s124
    %p126 = scmp.eq.s32.totalorder %s125, 0
    %s128 = sadd.s32 %s127, 1
    %s129 = scalar_select %p126, %s127, %s128
    %p132 = pneg %p126
    %p133 = scmp.eq.s32.totalorder %s11, 3
    %p134 = por %p132, %p133
    %p135 = scmp.ne.s32.totalorder %s127, %s130
    %p136 = scmp.eq.s32.totalorder %s11, 0
    %p137 = por %p135, %p136
    %p138 = scmp.ne.s32.totalorder %s127, %s130
    %p139 = scmp.eq.s32.totalorder %s16, 3
    %p140 = por %p138, %p139
    %p141 = scmp.ne.s32.totalorder %s130, %s131
    %p142 = scmp.eq.s32.totalorder %s16, 0
    %p143 = por %p141, %p142
    %p144 = scmp.ne.s32.totalorder %s130, %s131
    %p145 = scmp.eq.s32.totalorder %s17, 3
    %p146 = por %p144, %p145
    %p148 = scmp.ne.s32.totalorder %s131, %s147
    %p149 = scmp.eq.s32.totalorder %s17, 0
    %p150 = por %p148, %p149
    %s152 = sadd.s32 %s151, 1
    %p155 = scmp.eq.s32.totalorder %s11, 3
    %p156 = scmp.ne.s32.totalorder %s151, %s153
    %p157 = scmp.eq.s32.totalorder %s11, 0
    %p158 = por %p156, %p157
    %p159 = scmp.ne.s32.totalorder %s151, %s153
    %p160 = scmp.eq.s32.totalorder %s16, 3
    %p161 = por %p159, %p160
    %p162 = scmp.ne.s32.totalorder %s153, %s154
    %p163 = scmp.eq.s32.totalorder %s16, 0
    %p164 = por %p162, %p163
    %p165 = scmp.ne.s32.totalorder %s153, %s154
    %p166 = scmp.eq.s32.totalorder %s17, 3
    %p167 = por %p165, %p166
    %p169 = scmp.ne.s32.totalorder %s154, %s168
    %p170 = scmp.eq.s32.totalorder %s17, 0
    %p171 = por %p169, %p170
    %s172 = ssub.s32 %s18, %s30
    %s173 = ssub.s32 %s19, %s26
    %s174 = sor.u32 %s172, %s173
    %p175 = scmp.eq.s32.totalorder %s174, 0
    %s177 = sadd.s32 %s176, 1
    %s178 = scalar_select %p175, %s176, %s177
    %p181 = pneg %p175
    %p182 = scmp.eq.s32.totalorder %s11, 3
    %p183 = por %p181, %p182
    %p184 = scmp.ne.s32.totalorder %s176, %s179
    %p185 = scmp.eq.s32.totalorder %s11, 0
    %p186 = por %p184, %p185
    %p187 = scmp.ne.s32.totalorder %s176, %s179
    %p188 = scmp.eq.s32.totalorder %s16, 3
    %p189 = por %p187, %p188
    %p190 = scmp.ne.s32.totalorder %s179, %s180
    %p191 = scmp.eq.s32.totalorder %s16, 0
    %p192 = por %p190, %p191
    %p193 = scmp.ne.s32.totalorder %s179, %s180
    %p194 = scmp.eq.s32.totalorder %s17, 3
    %p195 = por %p193, %p194
    %p197 = scmp.ne.s32.totalorder %s180, %s196
    %p198 = scmp.eq.s32.totalorder %s17, 0
    %p199 = por %p197, %p198
    %p200 = scmp.le.s32.totalorder 1, %s11
    %p201 = scmp.lt.s32.totalorder %s11, 5
    %p202 = pnand %p200, %p201
    %p203 = pneg %p202
    // Predicated region
    $region9: #{spectral_distance.1} parent=5 // pred_check
      _
    $region10: #{spectral_distance.1} parent=5 // pred_check_branch
      %205 = sbr.rel (%p202) target = $region12
    $region11: #{spectral_distance.1} parent=5 // pred_region
      %s206 = ssub.s32 %s11, 1
      // Predicated region
      $region13: #{spectral_distance.1} parent=11 // pred_check
        %p207 = pneg %p164
      $region14: #{spectral_distance.1} parent=11 // pred_check_branch
        %209 = sbr.rel (%p207) target = $region16
      $region15: #{spectral_distance.1} parent=11 // pred_region
        _
      $region16: #{spectral_distance.1} parent=11 // pred_fallthru
        _
    $region12: #{spectral_distance.1} parent=5 // pred_fallthru
      _
    %p210 = scmp.lt.s32.totalorder %s11, 4
    // Predicated region
    $region17: #{spectral_distance.1} parent=5 // pred_check
      %p211 = pneg %p210
    $region18: #{spectral_distance.1} parent=5 // pred_check_branch
      %213 = sbr.rel (%p211) target = $region20
    $region19: #{spectral_distance.1} parent=5 // pred_region
      // Predicated region
      $region21: #{spectral_distance.1} parent=19 // pred_check
        %p214 = pneg %p45
      $region22: #{spectral_distance.1} parent=19 // pred_check_branch
        %216 = sbr.rel (%p214) target = $region24
      $region23: #{spectral_distance.1} parent=19 // pred_region
        %s217 = smul.u32 16, %s19
        %s218 = ssub.s32 33, %s217
        %p219 = scmp.lt.s32.totalorder %s218, 16
        %s220 = scalar_select %p219, %s218, 16
        %s221 = smul.u32 8, %s220
        %p222 = scmp.lt.s32.totalorder %s18, 1
        %s223 = scalar_select %p222, %s18, 1
        %p224 = scmp.lt.s32.totalorder %s217, 32
        %s225 = scalar_select %p224, %s217, 32
        %s226 = smul.addr %s223, 33
        %s227 = sadd.s32 %s225, %s226
        %s228 = smul.addr %s227, 8
        %s229 = scalar_lea.vmem %s0, %s228
        %s230 = smul.u32 16, %s19
        %s231 = ssub.s32 33, %s230
        %p232 = scmp.lt.s32.totalorder %s231, 16
        %s233 = scalar_select %p232, %s231, 16
        %s234 = smul.u32 8, %s233
      $region24: #{spectral_distance.1} parent=19 // pred_fallthru
        _
      // Predicated region
      $region25: #{spectral_distance.1} parent=19 // pred_check
        %p235 = pneg %p77
      $region26: #{spectral_distance.1} parent=19 // pred_check_branch
        %237 = sbr.rel (%p235) target = $region28
      $region27: #{spectral_distance.1} parent=19 // pred_region
        %s238 = sadd.s32 %s19, 1
        %s239 = smul.u32 %s238, 16
        %p240 = scmp.lt.s32.totalorder %s18, 1
        %s241 = scalar_select %p240, %s18, 1
        %p242 = scmp.lt.s32.totalorder %s239, 32
        %s243 = scalar_select %p242, %s239, 32
        %s244 = smul.addr %s241, 33
        %s245 = sadd.s32 %s243, %s244
        %s246 = smul.addr %s245, 8
        %s247 = scalar_lea.vmem %s1, %s246
        %s248 = sadd.s32 %s19, 1
        %s249 = smul.u32 %s248, 16
      $region28: #{spectral_distance.1} parent=19 // pred_fallthru
        _
      // Predicated region
      $region29: #{spectral_distance.1} parent=19 // pred_check
        %p250 = pneg %p105
      $region30: #{spectral_distance.1} parent=19 // pred_check_branch
        %252 = sbr.rel (%p250) target = $region32
      $region31: #{spectral_distance.1} parent=19 // pred_region
        %s253 = smul.u32 16, %s19
        %s254 = ssub.s32 33, %s253
        %p255 = scmp.lt.s32.totalorder %s254, 16
        %s256 = scalar_select %p255, %s254, 16
        %s257 = smul.u32 8, %s256
        %p258 = scmp.lt.s32.totalorder %s18, 1
        %s259 = scalar_select %p258, %s18, 1
        %p260 = scmp.lt.s32.totalorder %s253, 32
        %s261 = scalar_select %p260, %s253, 32
        %s262 = smul.addr %s259, 33
        %s263 = sadd.s32 %s261, %s262
        %s264 = smul.addr %s263, 8
        %s265 = scalar_lea.vmem %s2, %s264
        %s266 = smul.u32 16, %s19
        %s267 = ssub.s32 33, %s266
        %p268 = scmp.lt.s32.totalorder %s267, 16
        %s269 = scalar_select %p268, %s267, 16
        %s270 = smul.u32 8, %s269
      $region32: #{spectral_distance.1} parent=19 // pred_fallthru
        _
      // Predicated region
      $region33: #{spectral_distance.1} parent=19 // pred_check
        %p271 = pneg %p137
      $region34: #{spectral_distance.1} parent=19 // pred_check_branch
        %273 = sbr.rel (%p271) target = $region36
      $region35: #{spectral_distance.1} parent=19 // pred_region
        %s274 = sadd.s32 %s19, 1
        %s275 = smul.u32 %s274, 16
        %p276 = scmp.lt.s32.totalorder %s18, 1
        %s277 = scalar_select %p276, %s18, 1
        %p278 = scmp.lt.s32.totalorder %s275, 32
        %s279 = scalar_select %p278, %s275, 32
        %s280 = smul.addr %s277, 33
        %s281 = sadd.s32 %s279, %s280
        %s282 = smul.addr %s281, 8
        %s283 = scalar_lea.vmem %s3, %s282
        %s284 = sadd.s32 %s19, 1
        %s285 = smul.u32 %s284, 16
      $region36: #{spectral_distance.1} parent=19 // pred_fallthru
        _
    $region20: #{spectral_distance.1} parent=5 // pred_fallthru
      _
    %p286 = scmp.le.s32.totalorder 1, %s11
    %p287 = scmp.lt.s32.totalorder %s11, 5
    %p288 = pnand %p286, %p287
    %p289 = pneg %p288
    // Predicated region
    $region37: #{spectral_distance.1} parent=5 // pred_check
      _
    $region38: #{spectral_distance.1} parent=5 // pred_check_branch
      %291 = sbr.rel (%p288) target = $region40
    $region39: #{spectral_distance.1} parent=5 // pred_region
      %s292 = ssub.s32 %s11, 1
      %s293 = smul.u32 16, %s21
      %s294 = ssub.s32 33, %s293
      %p295 = scmp.lt.s32.totalorder %s294, 16
      %s296 = scalar_select %p295, %s294, 16
      %s297 = smul.u32 8, %s296
      %p298 = scmp.lt.s32.totalorder %s20, 1
      %s299 = scalar_select %p298, %s20, 1
      %p300 = scmp.lt.s32.totalorder %s293, 32
      %s301 = scalar_select %p300, %s293, 32
      %s302 = smul.addr %s299, 33
      %s303 = sadd.s32 %s301, %s302
      %s304 = smul.addr %s303, 8
      %s305 = scalar_lea.vmem %s0, %s304
      %p306 = pneg %p51
      %p307 = pneg %p48
      %s308 = sadd.s32 %s21, 1
      %s309 = smul.u32 %s308, 16
      %p310 = scmp.lt.s32.totalorder %s20, 1
      %s311 = scalar_select %p310, %s20, 1
      %p312 = scmp.lt.s32.totalorder %s309, 32
      %s313 = scalar_select %p312, %s309, 32
      %s314 = smul.addr %s311, 33
      %s315 = sadd.s32 %s313, %s314
      %s316 = smul.addr %s315, 8
      %s317 = scalar_lea.vmem %s1, %s316
      %p318 = pneg %p83
      %p319 = pneg %p80
      %s320 = smul.u32 16, %s21
      %s321 = ssub.s32 33, %s320
      %p322 = scmp.lt.s32.totalorder %s321, 16
      %s323 = scalar_select %p322, %s321, 16
      %s324 = smul.u32 8, %s323
      %p325 = scmp.lt.s32.totalorder %s20, 1
      %s326 = scalar_select %p325, %s20, 1
      %p327 = scmp.lt.s32.totalorder %s320, 32
      %s328 = scalar_select %p327, %s320, 32
      %s329 = smul.addr %s326, 33
      %s330 = sadd.s32 %s328, %s329
      %s331 = smul.addr %s330, 8
      %s332 = scalar_lea.vmem %s2, %s331
      %p333 = pneg %p111
      %p334 = pneg %p108
      %s335 = sadd.s32 %s21, 1
      %s336 = smul.u32 %s335, 16
      %p337 = scmp.lt.s32.totalorder %s20, 1
      %s338 = scalar_select %p337, %s20, 1
      %p339 = scmp.lt.s32.totalorder %s336, 32
      %s340 = scalar_select %p339, %s336, 32
      %s341 = smul.addr %s338, 33
      %s342 = sadd.s32 %s340, %s341
      %s343 = smul.addr %s342, 8
      %s344 = scalar_lea.vmem %s3, %s343
      %p345 = pneg %p143
      %p346 = pneg %p140
      %p347 = pneg %p164
      %p348 = pneg %p161
      %p349 = pneg %p192
      %p350 = pneg %p189
      %p351 = scmp.lt.s32.totalorder %s20, 1
      %s352 = scalar_select %p351, %s20, 1
      %p353 = scmp.lt.s32.totalorder %s21, 1
      %s354 = scalar_select %p353, %s21, 1
      %s355 = smul.addr %s352, 2
      %s356 = sadd.s32 %s354, %s355
      %s357 = smul.addr %s356, 8
      %s358 = scalar_lea.vmem %s5, %s357
      %s359 = smul.u32 16, %s21
      %s360 = ssub.s32 33, %s359
      %p361 = scmp.lt.s32.totalorder %s360, 16
      %s362 = scalar_select %p361, %s360, 16
      %s363 = smul.u32 8, %s362
      %p364 = scmp.lt.s32.totalorder %s20, 1
      %s365 = scalar_select %p364, %s20, 1
      %p366 = scmp.lt.s32.totalorder %s359, 32
      %s367 = scalar_select %p366, %s359, 32
      %s368 = smul.addr %s365, 33
      %s369 = sadd.s32 %s367, %s368
      %s370 = smul.addr %s369, 8
      %s371 = scalar_lea.vmem %s0, %s370
      %s372 = smul.u32 16, %s21
      %s373 = ssub.s32 33, %s372
      %p374 = scmp.lt.s32.totalorder %s373, 16
      %s375 = scalar_select %p374, %s373, 16
      %s376 = smul.u32 8, %s375
      %s377 = sadd.s32 %s21, 1
      %s378 = smul.u32 %s377, 16
      %p379 = scmp.lt.s32.totalorder %s20, 1
      %s380 = scalar_select %p379, %s20, 1
      %p381 = scmp.lt.s32.totalorder %s378, 32
      %s382 = scalar_select %p381, %s378, 32
      %s383 = smul.addr %s380, 33
      %s384 = sadd.s32 %s382, %s383
      %s385 = smul.addr %s384, 8
      %s386 = scalar_lea.vmem %s1, %s385
      %s387 = sadd.s32 %s21, 1
      %s388 = smul.u32 %s387, 16
      %s389 = smul.u32 16, %s21
      %s390 = ssub.s32 33, %s389
      %p391 = scmp.lt.s32.totalorder %s390, 16
      %s392 = scalar_select %p391, %s390, 16
      %s393 = smul.u32 8, %s392
      %p394 = scmp.lt.s32.totalorder %s20, 1
      %s395 = scalar_select %p394, %s20, 1
      %p396 = scmp.lt.s32.totalorder %s389, 32
      %s397 = scalar_select %p396, %s389, 32
      %s398 = smul.addr %s395, 33
      %s399 = sadd.s32 %s397, %s398
      %s400 = smul.addr %s399, 8
      %s401 = scalar_lea.vmem %s2, %s400
      %s402 = smul.u32 16, %s21
      %s403 = ssub.s32 33, %s402
      %p404 = scmp.lt.s32.totalorder %s403, 16
      %s405 = scalar_select %p404, %s403, 16
      %s406 = smul.u32 8, %s405
      %s407 = sadd.s32 %s21, 1
      %s408 = smul.u32 %s407, 16
      %p409 = scmp.lt.s32.totalorder %s20, 1
      %s410 = scalar_select %p409, %s20, 1
      %p411 = scmp.lt.s32.totalorder %s408, 32
      %s412 = scalar_select %p411, %s408, 32
      %s413 = smul.addr %s410, 33
      %s414 = sadd.s32 %s412, %s413
      %s415 = smul.addr %s414, 8
      %s416 = scalar_lea.vmem %s3, %s415
      %s417 = sadd.s32 %s21, 1
      %s418 = smul.u32 %s417, 16
      %p419 = scmp.lt.s32.totalorder %s20, 1
      %s420 = scalar_select %p419, %s20, 1
      %p421 = scmp.lt.s32.totalorder %s21, 1
      %s422 = scalar_select %p421, %s21, 1
      %s423 = smul.addr %s420, 2
      %s424 = sadd.s32 %s422, %s423
      %s425 = smul.addr %s424, 8
      %s426 = scalar_lea.vmem %s5, %s425
      %v427 = vld [vmem:[%s4] sm:$0xff]
      %v428 = vld [vmem:[%s4 + $0x8] sm:$0xff]
      %v429 = vld [vmem:[%s4 + $0x10] sm:$0xff]
      %v430 = vld [vmem:[%s4 + $0x18] sm:$0xff]
      %v431 = vld [vmem:[%s4 + $0x20] sm:$0xff]
      %v432 = vld [vmem:[%s4 + $0x28] sm:$0xff]
      %v433 = vld [vmem:[%s4 + $0x30] sm:$0xff]
      %v434 = vld [vmem:[%s4 + $0x38] sm:$0xff]
      %v435 = vld [vmem:[%s371] sm:$0xff]
      %v436 = vld [vmem:[%s371 + $0x8] sm:$0xff]
      %v437 = vld [vmem:[%s371 + $0x10] sm:$0xff]
      %v438 = vld [vmem:[%s371 + $0x18] sm:$0xff]
      %v439 = vld [vmem:[%s371 + $0x20] sm:$0xff]
      %v440 = vld [vmem:[%s371 + $0x28] sm:$0xff]
      %v441 = vld [vmem:[%s371 + $0x30] sm:$0xff]
      %v442 = vld [vmem:[%s371 + $0x38] sm:$0xff]
      %v443 = vld [vmem:[%s371 + $0x40] sm:$0xff]
      %v444 = vld [vmem:[%s371 + $0x48] sm:$0xff]
      %v445 = vld [vmem:[%s371 + $0x50] sm:$0xff]
      %v446 = vld [vmem:[%s371 + $0x58] sm:$0xff]
      %v447 = vld [vmem:[%s371 + $0x60] sm:$0xff]
      %v448 = vld [vmem:[%s371 + $0x68] sm:$0xff]
      %v449 = vld [vmem:[%s371 + $0x70] sm:$0xff]
      %v450 = vld [vmem:[%s371 + $0x78] sm:$0xff]
      %v451 = vld [vmem:[%s386] sm:$0xff]
      %vm469 = vcmask 1046528
      %v470 = vrot.slane %v435, 1
      %v471 = vrot.slane %v436, 1
      %v472 = vsel %vm469, %v470, %v471
      %v473 = vrot.slane %v437, 1
      %v474 = vsel %vm469, %v471, %v473
      %v475 = vrot.slane %v438, 1
      %v476 = vsel %vm469, %v473, %v475
      %v477 = vrot.slane %v439, 1
      %v478 = vsel %vm469, %v475, %v477
      %v479 = vrot.slane %v440, 1
      %v480 = vsel %vm469, %v477, %v479
      %v481 = vrot.slane %v441, 1
      %v482 = vsel %vm469, %v479, %v481
      %v483 = vrot.slane %v442, 1
      %v484 = vsel %vm469, %v481, %v483
      %v485 = vrot.slane %v443, 1
      %v486 = vsel %vm469, %v483, %v485
      %v487 = vrot.slane %v444, 1
      %v488 = vsel %vm469, %v485, %v487
      %v489 = vrot.slane %v445, 1
      %v490 = vsel %vm469, %v487, %v489
      %v491 = vrot.slane %v446, 1
      %v492 = vsel %vm469, %v489, %v491
      %v493 = vrot.slane %v447, 1
      %v494 = vsel %vm469, %v491, %v493
      %v495 = vrot.slane %v448, 1
      %v496 = vsel %vm469, %v493, %v495
      %v497 = vrot.slane %v449, 1
      %v498 = vsel %vm469, %v495, %v497
      %v499 = vrot.slane %v450, 1
      %v500 = vsel %vm469, %v497, %v499
      %v501 = vrot.slane %v451, 1
      %v502 = vsel %vm469, %v499, %v501
      %vm503 = vcmask 130048
      %v504 = vsel %vm503, %v472, 0
      %v506 = vsel %vm503, %v474, 0
      %v508 = vsel %vm503, %v476, 0
      %v510 = vsel %vm503, %v478, 0
      %v512 = vsel %vm503, %v480, 0
      %v514 = vsel %vm503, %v482, 0
      %v516 = vsel %vm503, %v484, 0
      %v518 = vsel %vm503, %v486, 0
      %v520 = vsel %vm503, %v488, 0
      %v522 = vsel %vm503, %v490, 0
      %v524 = vsel %vm503, %v492, 0
      %v526 = vsel %vm503, %v494, 0
      %v528 = vsel %vm503, %v496, 0
      %v530 = vsel %vm503, %v498, 0
      %v532 = vsel %vm503, %v500, 0
      %v534 = vsel %vm503, %v502, 0
      %536 = vmatpush.msra.mxu0 0.0
      %537 = vmatpush.msra.mxu0 0.0
      %538 = vmatpush.msra.mxu0 0.0
      %539 = vmatpush.msra.mxu0 0.0
      %540 = vmatpush.msra.mxu0 0.0
      %541 = vmatpush.msra.mxu0 0.0
      %542 = vmatpush.msra.mxu0 0.0
      %543 = vmatpush.msra.mxu0 0.0
      %544 = vmatpush.msra.mxu0 0.0
      %545 = vmatpush.msra.mxu0 0.0
      %546 = vmatpush.msra.mxu0 0.0
      %547 = vmatpush.msra.mxu0 0.0
      %548 = vmatpush.msra.mxu0 0.0
      %549 = vmatpush.msra.mxu0 0.0
      %550 = vmatpush.msra.mxu0 %v430
      %551 = vmatpush.msra.mxu0 %v429
      %552 = vmatmul.f32.gmra.mxu0 %v504
      %v553 = vpop.f32.mrf.mxu0
      %v554 = vadd.f32 0.0, %v553
      %555 = vmatmul.f32.gmra.mxu0 %v506
      %v556 = vpop.f32.mrf.mxu0
      %v557 = vadd.f32 0.0, %v556
      %558 = vmatmul.f32.gmra.mxu0 %v508
      %v559 = vpop.f32.mrf.mxu0
      %v560 = vadd.f32 0.0, %v559
      %561 = vmatmul.f32.gmra.mxu0 %v510
      %v562 = vpop.f32.mrf.mxu0
      %v563 = vadd.f32 0.0, %v562
      %564 = vmatmul.f32.gmra.mxu0 %v512
      %v565 = vpop.f32.mrf.mxu0
      %v566 = vadd.f32 0.0, %v565
      %567 = vmatmul.f32.gmra.mxu0 %v514
      %v568 = vpop.f32.mrf.mxu0
      %v569 = vadd.f32 0.0, %v568
      %570 = vmatmul.f32.gmra.mxu0 %v516
      %v571 = vpop.f32.mrf.mxu0
      %v572 = vadd.f32 0.0, %v571
      %573 = vmatmul.f32.gmra.mxu0 %v518
      %v574 = vpop.f32.mrf.mxu0
      %v575 = vadd.f32 0.0, %v574
      %576 = vmatmul.f32.gmra.mxu0 %v520
      %v577 = vpop.f32.mrf.mxu0
      %v578 = vadd.f32 0.0, %v577
      %579 = vmatmul.f32.gmra.mxu0 %v522
      %v580 = vpop.f32.mrf.mxu0
      %v581 = vadd.f32 0.0, %v580
      %582 = vmatmul.f32.gmra.mxu0 %v524
      %v583 = vpop.f32.mrf.mxu0
      %v584 = vadd.f32 0.0, %v583
      %585 = vmatmul.f32.gmra.mxu0 %v526
      %v586 = vpop.f32.mrf.mxu0
      %v587 = vadd.f32 0.0, %v586
      %588 = vmatmul.f32.gmra.mxu0 %v528
      %v589 = vpop.f32.mrf.mxu0
      %v590 = vadd.f32 0.0, %v589
      %591 = vmatmul.f32.gmra.mxu0 %v530
      %v592 = vpop.f32.mrf.mxu0
      %v593 = vadd.f32 0.0, %v592
      %594 = vmatmul.f32.gmra.mxu0 %v532
      %v595 = vpop.f32.mrf.mxu0
      %v596 = vadd.f32 0.0, %v595
      %597 = vmatmul.f32.gmra.mxu0 %v534
      %v598 = vpop.f32.mrf.mxu0
      %v599 = vadd.f32 0.0, %v598
      %600 = vdwg.mxu0
      %v601 = vsel %vm503, %v435, 0
      %v603 = vsel %vm503, %v436, 0
      %v605 = vsel %vm503, %v437, 0
      %v607 = vsel %vm503, %v438, 0
      %v609 = vsel %vm503, %v439, 0
      %v611 = vsel %vm503, %v440, 0
      %v613 = vsel %vm503, %v441, 0
      %v615 = vsel %vm503, %v442, 0
      %v617 = vsel %vm503, %v443, 0
      %v619 = vsel %vm503, %v444, 0
      %v621 = vsel %vm503, %v445, 0
      %v623 = vsel %vm503, %v446, 0
      %v625 = vsel %vm503, %v447, 0
      %v627 = vsel %vm503, %v448, 0
      %v629 = vsel %vm503, %v449, 0
      %v631 = vsel %vm503, %v450, 0
      %633 = vmatpush.msra.mxu0 0.0
      %634 = vmatpush.msra.mxu0 0.0
      %635 = vmatpush.msra.mxu0 0.0
      %636 = vmatpush.msra.mxu0 0.0
      %637 = vmatpush.msra.mxu0 0.0
      %638 = vmatpush.msra.mxu0 0.0
      %639 = vmatpush.msra.mxu0 0.0
      %640 = vmatpush.msra.mxu0 0.0
      %641 = vmatpush.msra.mxu0 0.0
      %642 = vmatpush.msra.mxu0 0.0
      %643 = vmatpush.msra.mxu0 0.0
      %644 = vmatpush.msra.mxu0 0.0
      %645 = vmatpush.msra.mxu0 0.0
      %646 = vmatpush.msra.mxu0 0.0
      %647 = vmatpush.msra.mxu0 %v428
      %648 = vmatpush.msra.mxu0 %v427
      %649 = vmatmul.f32.gmra.mxu0 %v601
      %v650 = vpop.f32.mrf.mxu0
      %v651 = vadd.f32 %v554, %v650
      %652 = vmatmul.f32.gmra.mxu0 %v603
      %v653 = vpop.f32.mrf.mxu0
      %v654 = vadd.f32 %v557, %v653
      %655 = vmatmul.f32.gmra.mxu0 %v605
      %v656 = vpop.f32.mrf.mxu0
      %v657 = vadd.f32 %v560, %v656
      %658 = vmatmul.f32.gmra.mxu0 %v607
      %v659 = vpop.f32.mrf.mxu0
      %v660 = vadd.f32 %v563, %v659
      %661 = vmatmul.f32.gmra.mxu0 %v609
      %v662 = vpop.f32.mrf.mxu0
      %v663 = vadd.f32 %v566, %v662
      %664 = vmatmul.f32.gmra.mxu0 %v611
      %v665 = vpop.f32.mrf.mxu0
      %v666 = vadd.f32 %v569, %v665
      %667 = vmatmul.f32.gmra.mxu0 %v613
      %v668 = vpop.f32.mrf.mxu0
      %v669 = vadd.f32 %v572, %v668
      %670 = vmatmul.f32.gmra.mxu0 %v615
      %v671 = vpop.f32.mrf.mxu0
      %v672 = vadd.f32 %v575, %v671
      %673 = vmatmul.f32.gmra.mxu0 %v617
      %v674 = vpop.f32.mrf.mxu0
      %v675 = vadd.f32 %v578, %v674
      %676 = vmatmul.f32.gmra.mxu0 %v619
      %v677 = vpop.f32.mrf.mxu0
      %v678 = vadd.f32 %v581, %v677
      %679 = vmatmul.f32.gmra.mxu0 %v621
      %v680 = vpop.f32.mrf.mxu0
      %v681 = vadd.f32 %v584, %v680
      %682 = vmatmul.f32.gmra.mxu0 %v623
      %v683 = vpop.f32.mrf.mxu0
      %v684 = vadd.f32 %v587, %v683
      %685 = vmatmul.f32.gmra.mxu0 %v625
      %v686 = vpop.f32.mrf.mxu0
      %v687 = vadd.f32 %v590, %v686
      %688 = vmatmul.f32.gmra.mxu0 %v627
      %v689 = vpop.f32.mrf.mxu0
      %v690 = vadd.f32 %v593, %v689
      %691 = vmatmul.f32.gmra.mxu0 %v629
      %v692 = vpop.f32.mrf.mxu0
      %v693 = vadd.f32 %v596, %v692
      %694 = vmatmul.f32.gmra.mxu0 %v631
      %v695 = vpop.f32.mrf.mxu0
      %v696 = vadd.f32 %v599, %v695
      %697 = vdwg.mxu0
      %vm698 = vcmask 1045504
      %v699 = vrot.slane %v435, 2
      %v700 = vrot.slane %v436, 2
      %v701 = vsel %vm698, %v699, %v700
      %v702 = vrot.slane %v437, 2
      %v703 = vsel %vm698, %v700, %v702
      %v704 = vrot.slane %v438, 2
      %v705 = vsel %vm698, %v702, %v704
      %v706 = vrot.slane %v439, 2
      %v707 = vsel %vm698, %v704, %v706
      %v708 = vrot.slane %v440, 2
      %v709 = vsel %vm698, %v706, %v708
      %v710 = vrot.slane %v441, 2
      %v711 = vsel %vm698, %v708, %v710
      %v712 = vrot.slane %v442, 2
      %v713 = vsel %vm698, %v710, %v712
      %v714 = vrot.slane %v443, 2
      %v715 = vsel %vm698, %v712, %v714
      %v716 = vrot.slane %v444, 2
      %v717 = vsel %vm698, %v714, %v716
      %v718 = vrot.slane %v445, 2
      %v719 = vsel %vm698, %v716, %v718
      %v720 = vrot.slane %v446, 2
      %v721 = vsel %vm698, %v718, %v720
      %v722 = vrot.slane %v447, 2
      %v723 = vsel %vm698, %v720, %v722
      %v724 = vrot.slane %v448, 2
      %v725 = vsel %vm698, %v722, %v724
      %v726 = vrot.slane %v449, 2
      %v727 = vsel %vm698, %v724, %v726
      %v728 = vrot.slane %v450, 2
      %v729 = vsel %vm698, %v726, %v728
      %v730 = vrot.slane %v451, 2
      %v731 = vsel %vm698, %v728, %v730
      %v732 = vsel %vm503, %v701, 0
      %v734 = vsel %vm503, %v703, 0
      %v736 = vsel %vm503, %v705, 0
      %v738 = vsel %vm503, %v707, 0
      %v740 = vsel %vm503, %v709, 0
      %v742 = vsel %vm503, %v711, 0
      %v744 = vsel %vm503, %v713, 0
      %v746 = vsel %vm503, %v715, 0
      %v748 = vsel %vm503, %v717, 0
      %v750 = vsel %vm503, %v719, 0
      %v752 = vsel %vm503, %v721, 0
      %v754 = vsel %vm503, %v723, 0
      %v756 = vsel %vm503, %v725, 0
      %v758 = vsel %vm503, %v727, 0
      %v760 = vsel %vm503, %v729, 0
      %v762 = vsel %vm503, %v731, 0
      %764 = vmatpush.msra.mxu0 0.0
      %765 = vmatpush.msra.mxu0 0.0
      %766 = vmatpush.msra.mxu0 0.0
      %767 = vmatpush.msra.mxu0 0.0
      %768 = vmatpush.msra.mxu0 0.0
      %769 = vmatpush.msra.mxu0 0.0
      %770 = vmatpush.msra.mxu0 0.0
      %771 = vmatpush.msra.mxu0 0.0
      %772 = vmatpush.msra.mxu0 0.0
      %773 = vmatpush.msra.mxu0 0.0
      %774 = vmatpush.msra.mxu0 0.0
      %775 = vmatpush.msra.mxu0 0.0
      %776 = vmatpush.msra.mxu0 0.0
      %777 = vmatpush.msra.mxu0 0.0
      %778 = vmatpush.msra.mxu0 %v432
      %779 = vmatpush.msra.mxu0 %v431
      %780 = vmatmul.f32.gmra.mxu0 %v732
      %v781 = vpop.f32.mrf.mxu0
      %v782 = vadd.f32 0.0, %v781
      %783 = vmatmul.f32.gmra.mxu0 %v734
      %v784 = vpop.f32.mrf.mxu0
      %v785 = vadd.f32 0.0, %v784
      %786 = vmatmul.f32.gmra.mxu0 %v736
      %v787 = vpop.f32.mrf.mxu0
      %v788 = vadd.f32 0.0, %v787
      %789 = vmatmul.f32.gmra.mxu0 %v738
      %v790 = vpop.f32.mrf.mxu0
      %v791 = vadd.f32 0.0, %v790
      %792 = vmatmul.f32.gmra.mxu0 %v740
      %v793 = vpop.f32.mrf.mxu0
      %v794 = vadd.f32 0.0, %v793
      %795 = vmatmul.f32.gmra.mxu0 %v742
      %v796 = vpop.f32.mrf.mxu0
      %v797 = vadd.f32 0.0, %v796
      %798 = vmatmul.f32.gmra.mxu0 %v744
      %v799 = vpop.f32.mrf.mxu0
      %v800 = vadd.f32 0.0, %v799
      %801 = vmatmul.f32.gmra.mxu0 %v746
      %v802 = vpop.f32.mrf.mxu0
      %v803 = vadd.f32 0.0, %v802
      %804 = vmatmul.f32.gmra.mxu0 %v748
      %v805 = vpop.f32.mrf.mxu0
      %v806 = vadd.f32 0.0, %v805
      %807 = vmatmul.f32.gmra.mxu0 %v750
      %v808 = vpop.f32.mrf.mxu0
      %v809 = vadd.f32 0.0, %v808
      %810 = vmatmul.f32.gmra.mxu0 %v752
      %v811 = vpop.f32.mrf.mxu0
      %v812 = vadd.f32 0.0, %v811
      %813 = vmatmul.f32.gmra.mxu0 %v754
      %v814 = vpop.f32.mrf.mxu0
      %v815 = vadd.f32 0.0, %v814
      %816 = vmatmul.f32.gmra.mxu0 %v756
      %v817 = vpop.f32.mrf.mxu0
      %v818 = vadd.f32 0.0, %v817
      %819 = vmatmul.f32.gmra.mxu0 %v758
      %v820 = vpop.f32.mrf.mxu0
      %v821 = vadd.f32 0.0, %v820
      %822 = vmatmul.f32.gmra.mxu0 %v760
      %v823 = vpop.f32.mrf.mxu0
      %v824 = vadd.f32 0.0, %v823
      %825 = vmatmul.f32.gmra.mxu0 %v762
      %v826 = vpop.f32.mrf.mxu0
      %v827 = vadd.f32 0.0, %v826
      %828 = vdwg.mxu0
      %v829 = vadd.f32 %v651, %v782
      %v830 = vadd.f32 %v654, %v785
      %v831 = vadd.f32 %v657, %v788
      %v832 = vadd.f32 %v660, %v791
      %v833 = vadd.f32 %v663, %v794
      %v834 = vadd.f32 %v666, %v797
      %v835 = vadd.f32 %v669, %v800
      %v836 = vadd.f32 %v672, %v803
      %v837 = vadd.f32 %v675, %v806
      %v838 = vadd.f32 %v678, %v809
      %v839 = vadd.f32 %v681, %v812
      %v840 = vadd.f32 %v684, %v815
      %v841 = vadd.f32 %v687, %v818
      %v842 = vadd.f32 %v690, %v821
      %v843 = vadd.f32 %v693, %v824
      %v844 = vadd.f32 %v696, %v827
      %vm845 = vcmask 1044480
      %v846 = vrot.slane %v435, 3
      %v847 = vrot.slane %v436, 3
      %v848 = vsel %vm845, %v846, %v847
      %v849 = vrot.slane %v437, 3
      %v850 = vsel %vm845, %v847, %v849
      %v851 = vrot.slane %v438, 3
      %v852 = vsel %vm845, %v849, %v851
      %v853 = vrot.slane %v439, 3
      %v854 = vsel %vm845, %v851, %v853
      %v855 = vrot.slane %v440, 3
      %v856 = vsel %vm845, %v853, %v855
      %v857 = vrot.slane %v441, 3
      %v858 = vsel %vm845, %v855, %v857
      %v859 = vrot.slane %v442, 3
      %v860 = vsel %vm845, %v857, %v859
      %v861 = vrot.slane %v443, 3
      %v862 = vsel %vm845, %v859, %v861
      %v863 = vrot.slane %v444, 3
      %v864 = vsel %vm845, %v861, %v863
      %v865 = vrot.slane %v445, 3
      %v866 = vsel %vm845, %v863, %v865
      %v867 = vrot.slane %v446, 3
      %v868 = vsel %vm845, %v865, %v867
      %v869 = vrot.slane %v447, 3
      %v870 = vsel %vm845, %v867, %v869
      %v871 = vrot.slane %v448, 3
      %v872 = vsel %vm845, %v869, %v871
      %v873 = vrot.slane %v449, 3
      %v874 = vsel %vm845, %v871, %v873
      %v875 = vrot.slane %v450, 3
      %v876 = vsel %vm845, %v873, %v875
      %v877 = vrot.slane %v451, 3
      %v878 = vsel %vm845, %v875, %v877
      %v879 = vsel %vm503, %v848, 0
      %v881 = vsel %vm503, %v850, 0
      %v883 = vsel %vm503, %v852, 0
      %v885 = vsel %vm503, %v854, 0
      %v887 = vsel %vm503, %v856, 0
      %v889 = vsel %vm503, %v858, 0
      %v891 = vsel %vm503, %v860, 0
      %v893 = vsel %vm503, %v862, 0
      %v895 = vsel %vm503, %v864, 0
      %v897 = vsel %vm503, %v866, 0
      %v899 = vsel %vm503, %v868, 0
      %v901 = vsel %vm503, %v870, 0
      %v903 = vsel %vm503, %v872, 0
      %v905 = vsel %vm503, %v874, 0
      %v907 = vsel %vm503, %v876, 0
      %v909 = vsel %vm503, %v878, 0
      %911 = vmatpush.msra.mxu0 0.0
      %912 = vmatpush.msra.mxu0 0.0
      %913 = vmatpush.msra.mxu0 0.0
      %914 = vmatpush.msra.mxu0 0.0
      %915 = vmatpush.msra.mxu0 0.0
      %916 = vmatpush.msra.mxu0 0.0
      %917 = vmatpush.msra.mxu0 0.0
      %918 = vmatpush.msra.mxu0 0.0
      %919 = vmatpush.msra.mxu0 0.0
      %920 = vmatpush.msra.mxu0 0.0
      %921 = vmatpush.msra.mxu0 0.0
      %922 = vmatpush.msra.mxu0 0.0
      %923 = vmatpush.msra.mxu0 0.0
      %924 = vmatpush.msra.mxu0 0.0
      %925 = vmatpush.msra.mxu0 %v434
      %926 = vmatpush.msra.mxu0 %v433
      %927 = vmatmul.f32.gmra.mxu0 %v879
      %v928 = vpop.f32.mrf.mxu0
      %v929 = vadd.f32 0.0, %v928
      %930 = vmatmul.f32.gmra.mxu0 %v881
      %v931 = vpop.f32.mrf.mxu0
      %v932 = vadd.f32 0.0, %v931
      %933 = vmatmul.f32.gmra.mxu0 %v883
      %v934 = vpop.f32.mrf.mxu0
      %v935 = vadd.f32 0.0, %v934
      %936 = vmatmul.f32.gmra.mxu0 %v885
      %v937 = vpop.f32.mrf.mxu0
      %v938 = vadd.f32 0.0, %v937
      %939 = vmatmul.f32.gmra.mxu0 %v887
      %v940 = vpop.f32.mrf.mxu0
      %v941 = vadd.f32 0.0, %v940
      %942 = vmatmul.f32.gmra.mxu0 %v889
      %v943 = vpop.f32.mrf.mxu0
      %v944 = vadd.f32 0.0, %v943
      %945 = vmatmul.f32.gmra.mxu0 %v891
      %v946 = vpop.f32.mrf.mxu0
      %v947 = vadd.f32 0.0, %v946
      %948 = vmatmul.f32.gmra.mxu0 %v893
      %v949 = vpop.f32.mrf.mxu0
      %v950 = vadd.f32 0.0, %v949
      %951 = vmatmul.f32.gmra.mxu0 %v895
      %v952 = vpop.f32.mrf.mxu0
      %v953 = vadd.f32 0.0, %v952
      %954 = vmatmul.f32.gmra.mxu0 %v897
      %v955 = vpop.f32.mrf.mxu0
      %v956 = vadd.f32 0.0, %v955
      %957 = vmatmul.f32.gmra.mxu0 %v899
      %v958 = vpop.f32.mrf.mxu0
      %v959 = vadd.f32 0.0, %v958
      %960 = vmatmul.f32.gmra.mxu0 %v901
      %v961 = vpop.f32.mrf.mxu0
      %v962 = vadd.f32 0.0, %v961
      %963 = vmatmul.f32.gmra.mxu0 %v903
      %v964 = vpop.f32.mrf.mxu0
      %v965 = vadd.f32 0.0, %v964
      %966 = vmatmul.f32.gmra.mxu0 %v905
      %v967 = vpop.f32.mrf.mxu0
      %v968 = vadd.f32 0.0, %v967
      %969 = vmatmul.f32.gmra.mxu0 %v907
      %v970 = vpop.f32.mrf.mxu0
      %v971 = vadd.f32 0.0, %v970
      %972 = vmatmul.f32.gmra.mxu0 %v909
      %v973 = vpop.f32.mrf.mxu0
      %v974 = vadd.f32 0.0, %v973
      %975 = vdwg.mxu0
      %v976 = vadd.f32 %v829, %v929
      %v977 = vadd.f32 %v830, %v932
      %v978 = vadd.f32 %v831, %v935
      %v979 = vadd.f32 %v832, %v938
      %v980 = vadd.f32 %v833, %v941
      %v981 = vadd.f32 %v834, %v944
      %v982 = vadd.f32 %v835, %v947
      %v983 = vadd.f32 %v836, %v950
      %v984 = vadd.f32 %v837, %v953
      %v985 = vadd.f32 %v838, %v956
      %v986 = vadd.f32 %v839, %v959
      %v987 = vadd.f32 %v840, %v962
      %v988 = vadd.f32 %v841, %v965
      %v989 = vadd.f32 %v842, %v968
      %v990 = vadd.f32 %v843, %v971
      %v991 = vadd.f32 %v844, %v974
      %v992 = vld [vmem:[%s401] sm:$0xff]
      %v993 = vld [vmem:[%s401 + $0x8] sm:$0xff]
      %v994 = vld [vmem:[%s401 + $0x10] sm:$0xff]
      %v995 = vld [vmem:[%s401 + $0x18] sm:$0xff]
      %v996 = vld [vmem:[%s401 + $0x20] sm:$0xff]
      %v997 = vld [vmem:[%s401 + $0x28] sm:$0xff]
      %v998 = vld [vmem:[%s401 + $0x30] sm:$0xff]
      %v999 = vld [vmem:[%s401 + $0x38] sm:$0xff]
      %v1000 = vld [vmem:[%s401 + $0x40] sm:$0xff]
      %v1001 = vld [vmem:[%s401 + $0x48] sm:$0xff]
      %v1002 = vld [vmem:[%s401 + $0x50] sm:$0xff]
      %v1003 = vld [vmem:[%s401 + $0x58] sm:$0xff]
      %v1004 = vld [vmem:[%s401 + $0x60] sm:$0xff]
      %v1005 = vld [vmem:[%s401 + $0x68] sm:$0xff]
      %v1006 = vld [vmem:[%s401 + $0x70] sm:$0xff]
      %v1007 = vld [vmem:[%s401 + $0x78] sm:$0xff]
      %v1008 = vld [vmem:[%s416] sm:$0xff]
      %v1026 = vrot.slane %v992, 1
      %v1027 = vrot.slane %v993, 1
      %v1028 = vsel %vm469, %v1026, %v1027
      %v1029 = vrot.slane %v994, 1
      %v1030 = vsel %vm469, %v1027, %v1029
      %v1031 = vrot.slane %v995, 1
      %v1032 = vsel %vm469, %v1029, %v1031
      %v1033 = vrot.slane %v996, 1
      %v1034 = vsel %vm469, %v1031, %v1033
      %v1035 = vrot.slane %v997, 1
      %v1036 = vsel %vm469, %v1033, %v1035
      %v1037 = vrot.slane %v998, 1
      %v1038 = vsel %vm469, %v1035, %v1037
      %v1039 = vrot.slane %v999, 1
      %v1040 = vsel %vm469, %v1037, %v1039
      %v1041 = vrot.slane %v1000, 1
      %v1042 = vsel %vm469, %v1039, %v1041
      %v1043 = vrot.slane %v1001, 1
      %v1044 = vsel %vm469, %v1041, %v1043
      %v1045 = vrot.slane %v1002, 1
      %v1046 = vsel %vm469, %v1043, %v1045
      %v1047 = vrot.slane %v1003, 1
      %v1048 = vsel %vm469, %v1045, %v1047
      %v1049 = vrot.slane %v1004, 1
      %v1050 = vsel %vm469, %v1047, %v1049
      %v1051 = vrot.slane %v1005, 1
      %v1052 = vsel %vm469, %v1049, %v1051
      %v1053 = vrot.slane %v1006, 1
      %v1054 = vsel %vm469, %v1051, %v1053
      %v1055 = vrot.slane %v1007, 1
      %v1056 = vsel %vm469, %v1053, %v1055
      %v1057 = vrot.slane %v1008, 1
      %v1058 = vsel %vm469, %v1055, %v1057
      %v1059 = vsel %vm503, %v1028, 0
      %v1061 = vsel %vm503, %v1030, 0
      %v1063 = vsel %vm503, %v1032, 0
      %v1065 = vsel %vm503, %v1034, 0
      %v1067 = vsel %vm503, %v1036, 0
      %v1069 = vsel %vm503, %v1038, 0
      %v1071 = vsel %vm503, %v1040, 0
      %v1073 = vsel %vm503, %v1042, 0
      %v1075 = vsel %vm503, %v1044, 0
      %v1077 = vsel %vm503, %v1046, 0
      %v1079 = vsel %vm503, %v1048, 0
      %v1081 = vsel %vm503, %v1050, 0
      %v1083 = vsel %vm503, %v1052, 0
      %v1085 = vsel %vm503, %v1054, 0
      %v1087 = vsel %vm503, %v1056, 0
      %v1089 = vsel %vm503, %v1058, 0
      %1091 = vmatpush.msra.mxu0 0.0
      %1092 = vmatpush.msra.mxu0 0.0
      %1093 = vmatpush.msra.mxu0 0.0
      %1094 = vmatpush.msra.mxu0 0.0
      %1095 = vmatpush.msra.mxu0 0.0
      %1096 = vmatpush.msra.mxu0 0.0
      %1097 = vmatpush.msra.mxu0 0.0
      %1098 = vmatpush.msra.mxu0 0.0
      %1099 = vmatpush.msra.mxu0 0.0
      %1100 = vmatpush.msra.mxu0 0.0
      %1101 = vmatpush.msra.mxu0 0.0
      %1102 = vmatpush.msra.mxu0 0.0
      %1103 = vmatpush.msra.mxu0 0.0
      %1104 = vmatpush.msra.mxu0 0.0
      %1105 = vmatpush.msra.mxu0 %v430
      %1106 = vmatpush.msra.mxu0 %v429
      %1107 = vmatmul.f32.gmra.mxu0 %v1059
      %v1108 = vpop.f32.mrf.mxu0
      %v1109 = vadd.f32 0.0, %v1108
      %1110 = vmatmul.f32.gmra.mxu0 %v1061
      %v1111 = vpop.f32.mrf.mxu0
      %v1112 = vadd.f32 0.0, %v1111
      %1113 = vmatmul.f32.gmra.mxu0 %v1063
      %v1114 = vpop.f32.mrf.mxu0
      %v1115 = vadd.f32 0.0, %v1114
      %1116 = vmatmul.f32.gmra.mxu0 %v1065
      %v1117 = vpop.f32.mrf.mxu0
      %v1118 = vadd.f32 0.0, %v1117
      %1119 = vmatmul.f32.gmra.mxu0 %v1067
      %v1120 = vpop.f32.mrf.mxu0
      %v1121 = vadd.f32 0.0, %v1120
      %1122 = vmatmul.f32.gmra.mxu0 %v1069
      %v1123 = vpop.f32.mrf.mxu0
      %v1124 = vadd.f32 0.0, %v1123
      %1125 = vmatmul.f32.gmra.mxu0 %v1071
      %v1126 = vpop.f32.mrf.mxu0
      %v1127 = vadd.f32 0.0, %v1126
      %1128 = vmatmul.f32.gmra.mxu0 %v1073
      %v1129 = vpop.f32.mrf.mxu0
      %v1130 = vadd.f32 0.0, %v1129
      %1131 = vmatmul.f32.gmra.mxu0 %v1075
      %v1132 = vpop.f32.mrf.mxu0
      %v1133 = vadd.f32 0.0, %v1132
      %1134 = vmatmul.f32.gmra.mxu0 %v1077
      %v1135 = vpop.f32.mrf.mxu0
      %v1136 = vadd.f32 0.0, %v1135
      %1137 = vmatmul.f32.gmra.mxu0 %v1079
      %v1138 = vpop.f32.mrf.mxu0
      %v1139 = vadd.f32 0.0, %v1138
      %1140 = vmatmul.f32.gmra.mxu0 %v1081
      %v1141 = vpop.f32.mrf.mxu0
      %v1142 = vadd.f32 0.0, %v1141
      %1143 = vmatmul.f32.gmra.mxu0 %v1083
      %v1144 = vpop.f32.mrf.mxu0
      %v1145 = vadd.f32 0.0, %v1144
      %1146 = vmatmul.f32.gmra.mxu0 %v1085
      %v1147 = vpop.f32.mrf.mxu0
      %v1148 = vadd.f32 0.0, %v1147
      %1149 = vmatmul.f32.gmra.mxu0 %v1087
      %v1150 = vpop.f32.mrf.mxu0
      %v1151 = vadd.f32 0.0, %v1150
      %1152 = vmatmul.f32.gmra.mxu0 %v1089
      %v1153 = vpop.f32.mrf.mxu0
      %v1154 = vadd.f32 0.0, %v1153
      %1155 = vdwg.mxu0
      %v1156 = vsel %vm503, %v992, 0
      %v1158 = vsel %vm503, %v993, 0
      %v1160 = vsel %vm503, %v994, 0
      %v1162 = vsel %vm503, %v995, 0
      %v1164 = vsel %vm503, %v996, 0
      %v1166 = vsel %vm503, %v997, 0
      %v1168 = vsel %vm503, %v998, 0
      %v1170 = vsel %vm503, %v999, 0
      %v1172 = vsel %vm503, %v1000, 0
      %v1174 = vsel %vm503, %v1001, 0
      %v1176 = vsel %vm503, %v1002, 0
      %v1178 = vsel %vm503, %v1003, 0
      %v1180 = vsel %vm503, %v1004, 0
      %v1182 = vsel %vm503, %v1005, 0
      %v1184 = vsel %vm503, %v1006, 0
      %v1186 = vsel %vm503, %v1007, 0
      %1188 = vmatpush.msra.mxu0 0.0
      %1189 = vmatpush.msra.mxu0 0.0
      %1190 = vmatpush.msra.mxu0 0.0
      %1191 = vmatpush.msra.mxu0 0.0
      %1192 = vmatpush.msra.mxu0 0.0
      %1193 = vmatpush.msra.mxu0 0.0
      %1194 = vmatpush.msra.mxu0 0.0
      %1195 = vmatpush.msra.mxu0 0.0
      %1196 = vmatpush.msra.mxu0 0.0
      %1197 = vmatpush.msra.mxu0 0.0
      %1198 = vmatpush.msra.mxu0 0.0
      %1199 = vmatpush.msra.mxu0 0.0
      %1200 = vmatpush.msra.mxu0 0.0
      %1201 = vmatpush.msra.mxu0 0.0
      %1202 = vmatpush.msra.mxu0 %v428
      %1203 = vmatpush.msra.mxu0 %v427
      %1204 = vmatmul.f32.gmra.mxu0 %v1156
      %v1205 = vpop.f32.mrf.mxu0
      %v1206 = vadd.f32 %v1109, %v1205
      %1207 = vmatmul.f32.gmra.mxu0 %v1158
      %v1208 = vpop.f32.mrf.mxu0
      %v1209 = vadd.f32 %v1112, %v1208
      %1210 = vmatmul.f32.gmra.mxu0 %v1160
      %v1211 = vpop.f32.mrf.mxu0
      %v1212 = vadd.f32 %v1115, %v1211
      %1213 = vmatmul.f32.gmra.mxu0 %v1162
      %v1214 = vpop.f32.mrf.mxu0
      %v1215 = vadd.f32 %v1118, %v1214
      %1216 = vmatmul.f32.gmra.mxu0 %v1164
      %v1217 = vpop.f32.mrf.mxu0
      %v1218 = vadd.f32 %v1121, %v1217
      %1219 = vmatmul.f32.gmra.mxu0 %v1166
      %v1220 = vpop.f32.mrf.mxu0
      %v1221 = vadd.f32 %v1124, %v1220
      %1222 = vmatmul.f32.gmra.mxu0 %v1168
      %v1223 = vpop.f32.mrf.mxu0
      %v1224 = vadd.f32 %v1127, %v1223
      %1225 = vmatmul.f32.gmra.mxu0 %v1170
      %v1226 = vpop.f32.mrf.mxu0
      %v1227 = vadd.f32 %v1130, %v1226
      %1228 = vmatmul.f32.gmra.mxu0 %v1172
      %v1229 = vpop.f32.mrf.mxu0
      %v1230 = vadd.f32 %v1133, %v1229
      %1231 = vmatmul.f32.gmra.mxu0 %v1174
      %v1232 = vpop.f32.mrf.mxu0
      %v1233 = vadd.f32 %v1136, %v1232
      %1234 = vmatmul.f32.gmra.mxu0 %v1176
      %v1235 = vpop.f32.mrf.mxu0
      %v1236 = vadd.f32 %v1139, %v1235
      %1237 = vmatmul.f32.gmra.mxu0 %v1178
      %v1238 = vpop.f32.mrf.mxu0
      %v1239 = vadd.f32 %v1142, %v1238
      %1240 = vmatmul.f32.gmra.mxu0 %v1180
      %v1241 = vpop.f32.mrf.mxu0
      %v1242 = vadd.f32 %v1145, %v1241
      %1243 = vmatmul.f32.gmra.mxu0 %v1182
      %v1244 = vpop.f32.mrf.mxu0
      %v1245 = vadd.f32 %v1148, %v1244
      %1246 = vmatmul.f32.gmra.mxu0 %v1184
      %v1247 = vpop.f32.mrf.mxu0
      %v1248 = vadd.f32 %v1151, %v1247
      %1249 = vmatmul.f32.gmra.mxu0 %v1186
      %v1250 = vpop.f32.mrf.mxu0
      %v1251 = vadd.f32 %v1154, %v1250
      %1252 = vdwg.mxu0
      %v1253 = vrot.slane %v992, 2
      %v1254 = vrot.slane %v993, 2
      %v1255 = vsel %vm698, %v1253, %v1254
      %v1256 = vrot.slane %v994, 2
      %v1257 = vsel %vm698, %v1254, %v1256
      %v1258 = vrot.slane %v995, 2
      %v1259 = vsel %vm698, %v1256, %v1258
      %v1260 = vrot.slane %v996, 2
      %v1261 = vsel %vm698, %v1258, %v1260
      %v1262 = vrot.slane %v997, 2
      %v1263 = vsel %vm698, %v1260, %v1262
      %v1264 = vrot.slane %v998, 2
      %v1265 = vsel %vm698, %v1262, %v1264
      %v1266 = vrot.slane %v999, 2
      %v1267 = vsel %vm698, %v1264, %v1266
      %v1268 = vrot.slane %v1000, 2
      %v1269 = vsel %vm698, %v1266, %v1268
      %v1270 = vrot.slane %v1001, 2
      %v1271 = vsel %vm698, %v1268, %v1270
      %v1272 = vrot.slane %v1002, 2
      %v1273 = vsel %vm698, %v1270, %v1272
      %v1274 = vrot.slane %v1003, 2
      %v1275 = vsel %vm698, %v1272, %v1274
      %v1276 = vrot.slane %v1004, 2
      %v1277 = vsel %vm698, %v1274, %v1276
      %v1278 = vrot.slane %v1005, 2
      %v1279 = vsel %vm698, %v1276, %v1278
      %v1280 = vrot.slane %v1006, 2
      %v1281 = vsel %vm698, %v1278, %v1280
      %v1282 = vrot.slane %v1007, 2
      %v1283 = vsel %vm698, %v1280, %v1282
      %v1284 = vrot.slane %v1008, 2
      %v1285 = vsel %vm698, %v1282, %v1284
      %v1286 = vsel %vm503, %v1255, 0
      %v1288 = vsel %vm503, %v1257, 0
      %v1290 = vsel %vm503, %v1259, 0
      %v1292 = vsel %vm503, %v1261, 0
      %v1294 = vsel %vm503, %v1263, 0
      %v1296 = vsel %vm503, %v1265, 0
      %v1298 = vsel %vm503, %v1267, 0
      %v1300 = vsel %vm503, %v1269, 0
      %v1302 = vsel %vm503, %v1271, 0
      %v1304 = vsel %vm503, %v1273, 0
      %v1306 = vsel %vm503, %v1275, 0
      %v1308 = vsel %vm503, %v1277, 0
      %v1310 = vsel %vm503, %v1279, 0
      %v1312 = vsel %vm503, %v1281, 0
      %v1314 = vsel %vm503, %v1283, 0
      %v1316 = vsel %vm503, %v1285, 0
      %1318 = vmatpush.msra.mxu0 0.0
      %1319 = vmatpush.msra.mxu0 0.0
      %1320 = vmatpush.msra.mxu0 0.0
      %1321 = vmatpush.msra.mxu0 0.0
      %1322 = vmatpush.msra.mxu0 0.0
      %1323 = vmatpush.msra.mxu0 0.0
      %1324 = vmatpush.msra.mxu0 0.0
      %1325 = vmatpush.msra.mxu0 0.0
      %1326 = vmatpush.msra.mxu0 0.0
      %1327 = vmatpush.msra.mxu0 0.0
      %1328 = vmatpush.msra.mxu0 0.0
      %1329 = vmatpush.msra.mxu0 0.0
      %1330 = vmatpush.msra.mxu0 0.0
      %1331 = vmatpush.msra.mxu0 0.0
      %1332 = vmatpush.msra.mxu0 %v432
      %1333 = vmatpush.msra.mxu0 %v431
      %1334 = vmatmul.f32.gmra.mxu0 %v1286
      %v1335 = vpop.f32.mrf.mxu0
      %v1336 = vadd.f32 0.0, %v1335
      %1337 = vmatmul.f32.gmra.mxu0 %v1288
      %v1338 = vpop.f32.mrf.mxu0
      %v1339 = vadd.f32 0.0, %v1338
      %1340 = vmatmul.f32.gmra.mxu0 %v1290
      %v1341 = vpop.f32.mrf.mxu0
      %v1342 = vadd.f32 0.0, %v1341
      %1343 = vmatmul.f32.gmra.mxu0 %v1292
      %v1344 = vpop.f32.mrf.mxu0
      %v1345 = vadd.f32 0.0, %v1344
      %1346 = vmatmul.f32.gmra.mxu0 %v1294
      %v1347 = vpop.f32.mrf.mxu0
      %v1348 = vadd.f32 0.0, %v1347
      %1349 = vmatmul.f32.gmra.mxu0 %v1296
      %v1350 = vpop.f32.mrf.mxu0
      %v1351 = vadd.f32 0.0, %v1350
      %1352 = vmatmul.f32.gmra.mxu0 %v1298
      %v1353 = vpop.f32.mrf.mxu0
      %v1354 = vadd.f32 0.0, %v1353
      %1355 = vmatmul.f32.gmra.mxu0 %v1300
      %v1356 = vpop.f32.mrf.mxu0
      %v1357 = vadd.f32 0.0, %v1356
      %1358 = vmatmul.f32.gmra.mxu0 %v1302
      %v1359 = vpop.f32.mrf.mxu0
      %v1360 = vadd.f32 0.0, %v1359
      %1361 = vmatmul.f32.gmra.mxu0 %v1304
      %v1362 = vpop.f32.mrf.mxu0
      %v1363 = vadd.f32 0.0, %v1362
      %1364 = vmatmul.f32.gmra.mxu0 %v1306
      %v1365 = vpop.f32.mrf.mxu0
      %v1366 = vadd.f32 0.0, %v1365
      %1367 = vmatmul.f32.gmra.mxu0 %v1308
      %v1368 = vpop.f32.mrf.mxu0
      %v1369 = vadd.f32 0.0, %v1368
      %1370 = vmatmul.f32.gmra.mxu0 %v1310
      %v1371 = vpop.f32.mrf.mxu0
      %v1372 = vadd.f32 0.0, %v1371
      %1373 = vmatmul.f32.gmra.mxu0 %v1312
      %v1374 = vpop.f32.mrf.mxu0
      %v1375 = vadd.f32 0.0, %v1374
      %1376 = vmatmul.f32.gmra.mxu0 %v1314
      %v1377 = vpop.f32.mrf.mxu0
      %v1378 = vadd.f32 0.0, %v1377
      %1379 = vmatmul.f32.gmra.mxu0 %v1316
      %v1380 = vpop.f32.mrf.mxu0
      %v1381 = vadd.f32 0.0, %v1380
      %1382 = vdwg.mxu0
      %v1383 = vadd.f32 %v1206, %v1336
      %v1384 = vadd.f32 %v1209, %v1339
      %v1385 = vadd.f32 %v1212, %v1342
      %v1386 = vadd.f32 %v1215, %v1345
      %v1387 = vadd.f32 %v1218, %v1348
      %v1388 = vadd.f32 %v1221, %v1351
      %v1389 = vadd.f32 %v1224, %v1354
      %v1390 = vadd.f32 %v1227, %v1357
      %v1391 = vadd.f32 %v1230, %v1360
      %v1392 = vadd.f32 %v1233, %v1363
      %v1393 = vadd.f32 %v1236, %v1366
      %v1394 = vadd.f32 %v1239, %v1369
      %v1395 = vadd.f32 %v1242, %v1372
      %v1396 = vadd.f32 %v1245, %v1375
      %v1397 = vadd.f32 %v1248, %v1378
      %v1398 = vadd.f32 %v1251, %v1381
      %v1399 = vrot.slane %v992, 3
      %v1400 = vrot.slane %v993, 3
      %v1401 = vsel %vm845, %v1399, %v1400
      %v1402 = vrot.slane %v994, 3
      %v1403 = vsel %vm845, %v1400, %v1402
      %v1404 = vrot.slane %v995, 3
      %v1405 = vsel %vm845, %v1402, %v1404
      %v1406 = vrot.slane %v996, 3
      %v1407 = vsel %vm845, %v1404, %v1406
      %v1408 = vrot.slane %v997, 3
      %v1409 = vsel %vm845, %v1406, %v1408
      %v1410 = vrot.slane %v998, 3
      %v1411 = vsel %vm845, %v1408, %v1410
      %v1412 = vrot.slane %v999, 3
      %v1413 = vsel %vm845, %v1410, %v1412
      %v1414 = vrot.slane %v1000, 3
      %v1415 = vsel %vm845, %v1412, %v1414
      %v1416 = vrot.slane %v1001, 3
      %v1417 = vsel %vm845, %v1414, %v1416
      %v1418 = vrot.slane %v1002, 3
      %v1419 = vsel %vm845, %v1416, %v1418
      %v1420 = vrot.slane %v1003, 3
      %v1421 = vsel %vm845, %v1418, %v1420
      %v1422 = vrot.slane %v1004, 3
      %v1423 = vsel %vm845, %v1420, %v1422
      %v1424 = vrot.slane %v1005, 3
      %v1425 = vsel %vm845, %v1422, %v1424
      %v1426 = vrot.slane %v1006, 3
      %v1427 = vsel %vm845, %v1424, %v1426
      %v1428 = vrot.slane %v1007, 3
      %v1429 = vsel %vm845, %v1426, %v1428
      %v1430 = vrot.slane %v1008, 3
      %v1431 = vsel %vm845, %v1428, %v1430
      %v1432 = vsel %vm503, %v1401, 0
      %v1434 = vsel %vm503, %v1403, 0
      %v1436 = vsel %vm503, %v1405, 0
      %v1438 = vsel %vm503, %v1407, 0
      %v1440 = vsel %vm503, %v1409, 0
      %v1442 = vsel %vm503, %v1411, 0
      %v1444 = vsel %vm503, %v1413, 0
      %v1446 = vsel %vm503, %v1415, 0
      %v1448 = vsel %vm503, %v1417, 0
      %v1450 = vsel %vm503, %v1419, 0
      %v1452 = vsel %vm503, %v1421, 0
      %v1454 = vsel %vm503, %v1423, 0
      %v1456 = vsel %vm503, %v1425, 0
      %v1458 = vsel %vm503, %v1427, 0
      %v1460 = vsel %vm503, %v1429, 0
      %v1462 = vsel %vm503, %v1431, 0
      %1464 = vmatpush.msra.mxu0 0.0
      %1465 = vmatpush.msra.mxu0 0.0
      %1466 = vmatpush.msra.mxu0 0.0
      %1467 = vmatpush.msra.mxu0 0.0
      %1468 = vmatpush.msra.mxu0 0.0
      %1469 = vmatpush.msra.mxu0 0.0
      %1470 = vmatpush.msra.mxu0 0.0
      %1471 = vmatpush.msra.mxu0 0.0
      %1472 = vmatpush.msra.mxu0 0.0
      %1473 = vmatpush.msra.mxu0 0.0
      %1474 = vmatpush.msra.mxu0 0.0
      %1475 = vmatpush.msra.mxu0 0.0
      %1476 = vmatpush.msra.mxu0 0.0
      %1477 = vmatpush.msra.mxu0 0.0
      %1478 = vmatpush.msra.mxu0 %v434
      %1479 = vmatpush.msra.mxu0 %v433
      %1480 = vmatmul.f32.gmra.mxu0 %v1432
      %v1481 = vpop.f32.mrf.mxu0
      %v1482 = vadd.f32 0.0, %v1481
      %1483 = vmatmul.f32.gmra.mxu0 %v1434
      %v1484 = vpop.f32.mrf.mxu0
      %v1485 = vadd.f32 0.0, %v1484
      %1486 = vmatmul.f32.gmra.mxu0 %v1436
      %v1487 = vpop.f32.mrf.mxu0
      %v1488 = vadd.f32 0.0, %v1487
      %1489 = vmatmul.f32.gmra.mxu0 %v1438
      %v1490 = vpop.f32.mrf.mxu0
      %v1491 = vadd.f32 0.0, %v1490
      %1492 = vmatmul.f32.gmra.mxu0 %v1440
      %v1493 = vpop.f32.mrf.mxu0
      %v1494 = vadd.f32 0.0, %v1493
      %1495 = vmatmul.f32.gmra.mxu0 %v1442
      %v1496 = vpop.f32.mrf.mxu0
      %v1497 = vadd.f32 0.0, %v1496
      %1498 = vmatmul.f32.gmra.mxu0 %v1444
      %v1499 = vpop.f32.mrf.mxu0
      %v1500 = vadd.f32 0.0, %v1499
      %1501 = vmatmul.f32.gmra.mxu0 %v1446
      %v1502 = vpop.f32.mrf.mxu0
      %v1503 = vadd.f32 0.0, %v1502
      %1504 = vmatmul.f32.gmra.mxu0 %v1448
      %v1505 = vpop.f32.mrf.mxu0
      %v1506 = vadd.f32 0.0, %v1505
      %1507 = vmatmul.f32.gmra.mxu0 %v1450
      %v1508 = vpop.f32.mrf.mxu0
      %v1509 = vadd.f32 0.0, %v1508
      %1510 = vmatmul.f32.gmra.mxu0 %v1452
      %v1511 = vpop.f32.mrf.mxu0
      %v1512 = vadd.f32 0.0, %v1511
      %1513 = vmatmul.f32.gmra.mxu0 %v1454
      %v1514 = vpop.f32.mrf.mxu0
      %v1515 = vadd.f32 0.0, %v1514
      %1516 = vmatmul.f32.gmra.mxu0 %v1456
      %v1517 = vpop.f32.mrf.mxu0
      %v1518 = vadd.f32 0.0, %v1517
      %1519 = vmatmul.f32.gmra.mxu0 %v1458
      %v1520 = vpop.f32.mrf.mxu0
      %v1521 = vadd.f32 0.0, %v1520
      %1522 = vmatmul.f32.gmra.mxu0 %v1460
      %v1523 = vpop.f32.mrf.mxu0
      %v1524 = vadd.f32 0.0, %v1523
      %1525 = vmatmul.f32.gmra.mxu0 %v1462
      %v1526 = vpop.f32.mrf.mxu0
      %v1527 = vadd.f32 0.0, %v1526
      %1528 = vdwg.mxu0
      %v1529 = vadd.f32 %v1383, %v1482
      %v1530 = vadd.f32 %v1384, %v1485
      %v1531 = vadd.f32 %v1385, %v1488
      %v1532 = vadd.f32 %v1386, %v1491
      %v1533 = vadd.f32 %v1387, %v1494
      %v1534 = vadd.f32 %v1388, %v1497
      %v1535 = vadd.f32 %v1389, %v1500
      %v1536 = vadd.f32 %v1390, %v1503
      %v1537 = vadd.f32 %v1391, %v1506
      %v1538 = vadd.f32 %v1392, %v1509
      %v1539 = vadd.f32 %v1393, %v1512
      %v1540 = vadd.f32 %v1394, %v1515
      %v1541 = vadd.f32 %v1395, %v1518
      %v1542 = vadd.f32 %v1396, %v1521
      %v1543 = vadd.f32 %v1397, %v1524
      %v1544 = vadd.f32 %v1398, %v1527
      %v1545 = vmul.f32 %v1529, %v1529
      %v1546 = vmul.f32 %v1530, %v1530
      %v1547 = vmul.f32 %v1531, %v1531
      %v1548 = vmul.f32 %v1532, %v1532
      %v1549 = vmul.f32 %v1533, %v1533
      %v1550 = vmul.f32 %v1534, %v1534
      %v1551 = vmul.f32 %v1535, %v1535
      %v1552 = vmul.f32 %v1536, %v1536
      %v1553 = vmul.f32 %v1537, %v1537
      %v1554 = vmul.f32 %v1538, %v1538
      %v1555 = vmul.f32 %v1539, %v1539
      %v1556 = vmul.f32 %v1540, %v1540
      %v1557 = vmul.f32 %v1541, %v1541
      %v1558 = vmul.f32 %v1542, %v1542
      %v1559 = vmul.f32 %v1543, %v1543
      %v1560 = vmul.f32 %v1544, %v1544
      %v1561 = vmul.f32 %v976, %v976
      %v1562 = vmul.f32 %v977, %v977
      %v1563 = vmul.f32 %v978, %v978
      %v1564 = vmul.f32 %v979, %v979
      %v1565 = vmul.f32 %v980, %v980
      %v1566 = vmul.f32 %v981, %v981
      %v1567 = vmul.f32 %v982, %v982
      %v1568 = vmul.f32 %v983, %v983
      %v1569 = vmul.f32 %v984, %v984
      %v1570 = vmul.f32 %v985, %v985
      %v1571 = vmul.f32 %v986, %v986
      %v1572 = vmul.f32 %v987, %v987
      %v1573 = vmul.f32 %v988, %v988
      %v1574 = vmul.f32 %v989, %v989
      %v1575 = vmul.f32 %v990, %v990
      %v1576 = vmul.f32 %v991, %v991
      %v1577 = vsub.f32 %v1545, %v1561
      %v1578 = vsub.f32 %v1546, %v1562
      %v1579 = vsub.f32 %v1547, %v1563
      %v1580 = vsub.f32 %v1548, %v1564
      %v1581 = vsub.f32 %v1549, %v1565
      %v1582 = vsub.f32 %v1550, %v1566
      %v1583 = vsub.f32 %v1551, %v1567
      %v1584 = vsub.f32 %v1552, %v1568
      %v1585 = vsub.f32 %v1553, %v1569
      %v1586 = vsub.f32 %v1554, %v1570
      %v1587 = vsub.f32 %v1555, %v1571
      %v1588 = vsub.f32 %v1556, %v1572
      %v1589 = vsub.f32 %v1557, %v1573
      %v1590 = vsub.f32 %v1558, %v1574
      %v1591 = vsub.f32 %v1559, %v1575
      %v1592 = vsub.f32 %v1560, %v1576
      %1609 = vrot.lane.b32.xlu0 %v1577, 64
      %v1610 = vpop.permute.xlu0 %1609
      %1611 = vrot.lane.b32.xlu0 %v1578, 64
      %v1612 = vpop.permute.xlu0 %1611
      %1613 = vrot.lane.b32.xlu0 %v1579, 64
      %v1614 = vpop.permute.xlu0 %1613
      %1615 = vrot.lane.b32.xlu0 %v1580, 64
      %v1616 = vpop.permute.xlu0 %1615
      %1617 = vrot.lane.b32.xlu0 %v1581, 64
      %v1618 = vpop.permute.xlu0 %1617
      %1619 = vrot.lane.b32.xlu0 %v1582, 64
      %v1620 = vpop.permute.xlu0 %1619
      %1621 = vrot.lane.b32.xlu0 %v1583, 64
      %v1622 = vpop.permute.xlu0 %1621
      %1623 = vrot.lane.b32.xlu0 %v1584, 64
      %v1624 = vpop.permute.xlu0 %1623
      %1625 = vrot.lane.b32.xlu0 %v1585, 64
      %v1626 = vpop.permute.xlu0 %1625
      %1627 = vrot.lane.b32.xlu0 %v1586, 64
      %v1628 = vpop.permute.xlu0 %1627
      %1629 = vrot.lane.b32.xlu0 %v1587, 64
      %v1630 = vpop.permute.xlu0 %1629
      %1631 = vrot.lane.b32.xlu0 %v1588, 64
      %v1632 = vpop.permute.xlu0 %1631
      %1633 = vrot.lane.b32.xlu0 %v1589, 64
      %v1634 = vpop.permute.xlu0 %1633
      %1635 = vrot.lane.b32.xlu0 %v1590, 64
      %v1636 = vpop.permute.xlu0 %1635
      %1637 = vrot.lane.b32.xlu0 %v1591, 64
      %v1638 = vpop.permute.xlu0 %1637
      %1639 = vrot.lane.b32.xlu0 %v1592, 64
      %v1640 = vpop.permute.xlu0 %1639
      %v1657 = vadd.f32 %v1577, %v1610
      %v1658 = vadd.f32 %v1578, %v1612
      %v1659 = vadd.f32 %v1579, %v1614
      %v1660 = vadd.f32 %v1580, %v1616
      %v1661 = vadd.f32 %v1581, %v1618
      %v1662 = vadd.f32 %v1582, %v1620
      %v1663 = vadd.f32 %v1583, %v1622
      %v1664 = vadd.f32 %v1584, %v1624
      %v1665 = vadd.f32 %v1585, %v1626
      %v1666 = vadd.f32 %v1586, %v1628
      %v1667 = vadd.f32 %v1587, %v1630
      %v1668 = vadd.f32 %v1588, %v1632
      %v1669 = vadd.f32 %v1589, %v1634
      %v1670 = vadd.f32 %v1590, %v1636
      %v1671 = vadd.f32 %v1591, %v1638
      %v1672 = vadd.f32 %v1592, %v1640
      %v1673 = vlaneseq
      %v1674 = vshrl.u32 %v1673, 7
      %v1675 = vadd.s32 %v1674, 8
      %v1676 = vadd.s32 %v1674, 16
      %v1677 = vadd.s32 %v1674, 24
      %v1678 = vadd.s32 %v1674, 32
      %v1679 = vadd.s32 %v1674, 40
      %v1680 = vadd.s32 %v1674, 48
      %v1681 = vadd.s32 %v1674, 56
      %v1682 = vadd.s32 %v1674, 64
      %v1683 = vadd.s32 %v1674, 72
      %v1684 = vadd.s32 %v1674, 80
      %v1685 = vadd.s32 %v1674, 88
      %v1686 = vadd.s32 %v1674, 96
      %v1687 = vadd.s32 %v1674, 104
      %v1688 = vadd.s32 %v1674, 112
      %v1689 = vadd.s32 %v1674, 120
      %s1690 = smul.u32 %s21, 128
      %v1691 = vstv %s1690
      %v1692 = vadd.s32 %v1691, %v1674
      %v1693 = vadd.s32 %v1691, %v1675
      %v1694 = vadd.s32 %v1691, %v1676
      %v1695 = vadd.s32 %v1691, %v1677
      %v1696 = vadd.s32 %v1691, %v1678
      %v1697 = vadd.s32 %v1691, %v1679
      %v1698 = vadd.s32 %v1691, %v1680
      %v1699 = vadd.s32 %v1691, %v1681
      %v1700 = vadd.s32 %v1691, %v1682
      %v1701 = vadd.s32 %v1691, %v1683
      %v1702 = vadd.s32 %v1691, %v1684
      %v1703 = vadd.s32 %v1691, %v1685
      %v1704 = vadd.s32 %v1691, %v1686
      %v1705 = vadd.s32 %v1691, %v1687
      %v1706 = vadd.s32 %v1691, %v1688
      %v1707 = vadd.s32 %v1691, %v1689
      %vm1708 = vcmp.lt.s32.totalorder %v1692, 253
      %vm1709 = vcmp.lt.s32.totalorder %v1693, 253
      %vm1710 = vcmp.lt.s32.totalorder %v1694, 253
      %vm1711 = vcmp.lt.s32.totalorder %v1695, 253
      %vm1712 = vcmp.lt.s32.totalorder %v1696, 253
      %vm1713 = vcmp.lt.s32.totalorder %v1697, 253
      %vm1714 = vcmp.lt.s32.totalorder %v1698, 253
      %vm1715 = vcmp.lt.s32.totalorder %v1699, 253
      %vm1716 = vcmp.lt.s32.totalorder %v1700, 253
      %vm1717 = vcmp.lt.s32.totalorder %v1701, 253
      %vm1718 = vcmp.lt.s32.totalorder %v1702, 253
      %vm1719 = vcmp.lt.s32.totalorder %v1703, 253
      %vm1720 = vcmp.lt.s32.totalorder %v1704, 253
      %vm1721 = vcmp.lt.s32.totalorder %v1705, 253
      %vm1722 = vcmp.lt.s32.totalorder %v1706, 253
      %vm1723 = vcmp.lt.s32.totalorder %v1707, 253
      %v1724 = vsel %vm1708, 1, 0
      %v1725 = vsel %vm1709, 1, 0
      %v1726 = vsel %vm1710, 1, 0
      %v1727 = vsel %vm1711, 1, 0
      %v1728 = vsel %vm1712, 1, 0
      %v1729 = vsel %vm1713, 1, 0
      %v1730 = vsel %vm1714, 1, 0
      %v1731 = vsel %vm1715, 1, 0
      %v1732 = vsel %vm1716, 1, 0
      %v1733 = vsel %vm1717, 1, 0
      %v1734 = vsel %vm1718, 1, 0
      %v1735 = vsel %vm1719, 1, 0
      %v1736 = vsel %vm1720, 1, 0
      %v1737 = vsel %vm1721, 1, 0
      %v1738 = vsel %vm1722, 1, 0
      %v1739 = vsel %vm1723, 1, 0
      %vm1740 = vcmp.eq.s32.totalorder %v1724, 1
      %vm1741 = vcmp.eq.s32.totalorder %v1725, 1
      %vm1742 = vcmp.eq.s32.totalorder %v1726, 1
      %vm1743 = vcmp.eq.s32.totalorder %v1727, 1
      %vm1744 = vcmp.eq.s32.totalorder %v1728, 1
      %vm1745 = vcmp.eq.s32.totalorder %v1729, 1
      %vm1746 = vcmp.eq.s32.totalorder %v1730, 1
      %vm1747 = vcmp.eq.s32.totalorder %v1731, 1
      %vm1748 = vcmp.eq.s32.totalorder %v1732, 1
      %vm1749 = vcmp.eq.s32.totalorder %v1733, 1
      %vm1750 = vcmp.eq.s32.totalorder %v1734, 1
      %vm1751 = vcmp.eq.s32.totalorder %v1735, 1
      %vm1752 = vcmp.eq.s32.totalorder %v1736, 1
      %vm1753 = vcmp.eq.s32.totalorder %v1737, 1
      %vm1754 = vcmp.eq.s32.totalorder %v1738, 1
      %vm1755 = vcmp.eq.s32.totalorder %v1739, 1
      %v1756 = vsel %vm1740, %v1657, 0.0
      %v1757 = vsel %vm1741, %v1658, 0.0
      %v1758 = vsel %vm1742, %v1659, 0.0
      %v1759 = vsel %vm1743, %v1660, 0.0
      %v1760 = vsel %vm1744, %v1661, 0.0
      %v1761 = vsel %vm1745, %v1662, 0.0
      %v1762 = vsel %vm1746, %v1663, 0.0
      %v1763 = vsel %vm1747, %v1664, 0.0
      %v1764 = vsel %vm1748, %v1665, 0.0
      %v1765 = vsel %vm1749, %v1666, 0.0
      %v1766 = vsel %vm1750, %v1667, 0.0
      %v1767 = vsel %vm1751, %v1668, 0.0
      %v1768 = vsel %vm1752, %v1669, 0.0
      %v1769 = vsel %vm1753, %v1670, 0.0
      %v1770 = vsel %vm1754, %v1671, 0.0
      %v1771 = vsel %vm1755, %v1672, 0.0
      %v1772 = vand.u32 2147483647, %v1756
      %v1773 = vand.u32 2147483647, %v1757
      %v1774 = vand.u32 2147483647, %v1758
      %v1775 = vand.u32 2147483647, %v1759
      %v1776 = vand.u32 2147483647, %v1760
      %v1777 = vand.u32 2147483647, %v1761
      %v1778 = vand.u32 2147483647, %v1762
      %v1779 = vand.u32 2147483647, %v1763
      %v1780 = vand.u32 2147483647, %v1764
      %v1781 = vand.u32 2147483647, %v1765
      %v1782 = vand.u32 2147483647, %v1766
      %v1783 = vand.u32 2147483647, %v1767
      %v1784 = vand.u32 2147483647, %v1768
      %v1785 = vand.u32 2147483647, %v1769
      %v1786 = vand.u32 2147483647, %v1770
      %v1787 = vand.u32 2147483647, %v1771
      %vm1788 = vcmask 523264
      %v1789 = vsel %vm1788, %v1772, 0.0
      %v1790 = vsel %vm1788, %v1773, 0.0
      %v1791 = vadd.f32 %v1789, %v1790
      %v1792 = vsel %vm1788, %v1774, 0.0
      %v1793 = vadd.f32 %v1791, %v1792
      %v1794 = vsel %vm1788, %v1775, 0.0
      %v1795 = vadd.f32 %v1793, %v1794
      %v1796 = vsel %vm1788, %v1776, 0.0
      %v1797 = vadd.f32 %v1795, %v1796
      %v1798 = vsel %vm1788, %v1777, 0.0
      %v1799 = vadd.f32 %v1797, %v1798
      %v1800 = vsel %vm1788, %v1778, 0.0
      %v1801 = vadd.f32 %v1799, %v1800
      %v1802 = vsel %vm1788, %v1779, 0.0
      %v1803 = vadd.f32 %v1801, %v1802
      %v1804 = vsel %vm1788, %v1780, 0.0
      %v1805 = vadd.f32 %v1803, %v1804
      %v1806 = vsel %vm1788, %v1781, 0.0
      %v1807 = vadd.f32 %v1805, %v1806
      %v1808 = vsel %vm1788, %v1782, 0.0
      %v1809 = vadd.f32 %v1807, %v1808
      %v1810 = vsel %vm1788, %v1783, 0.0
      %v1811 = vadd.f32 %v1809, %v1810
      %v1812 = vsel %vm1788, %v1784, 0.0
      %v1813 = vadd.f32 %v1811, %v1812
      %v1814 = vsel %vm1788, %v1785, 0.0
      %v1815 = vadd.f32 %v1813, %v1814
      %v1816 = vsel %vm1788, %v1786, 0.0
      %v1817 = vadd.f32 %v1815, %v1816
      %v1818 = vsel %vm1788, %v1787, 0.0
      %v1819 = vadd.f32 %v1817, %v1818
      %1820 = vadd.xlane.f32.xlu0 %v1819
      %v1821 = vpop.xlane.xlu0 %1820
      %v1822 = vrot.slane %v1821, 4
      %v1823 = vadd.f32 %v1821, %v1822
      %v1824 = vrot.slane %v1823, 2
      %v1825 = vadd.f32 %v1823, %v1824
      %v1826 = vrot.slane %v1825, 1
      %v1827 = vadd.f32 %v1825, %v1826
      %s1828 = vtos %v1827
      %v1829 = vmul.f32 %v1756, %v1756
      %v1830 = vmul.f32 %v1757, %v1757
      %v1831 = vmul.f32 %v1758, %v1758
      %v1832 = vmul.f32 %v1759, %v1759
      %v1833 = vmul.f32 %v1760, %v1760
      %v1834 = vmul.f32 %v1761, %v1761
      %v1835 = vmul.f32 %v1762, %v1762
      %v1836 = vmul.f32 %v1763, %v1763
      %v1837 = vmul.f32 %v1764, %v1764
      %v1838 = vmul.f32 %v1765, %v1765
      %v1839 = vmul.f32 %v1766, %v1766
      %v1840 = vmul.f32 %v1767, %v1767
      %v1841 = vmul.f32 %v1768, %v1768
      %v1842 = vmul.f32 %v1769, %v1769
      %v1843 = vmul.f32 %v1770, %v1770
      %v1844 = vmul.f32 %v1771, %v1771
      %v1845 = vsel %vm1788, %v1829, 0.0
      %v1846 = vsel %vm1788, %v1830, 0.0
      %v1847 = vadd.f32 %v1845, %v1846
      %v1848 = vsel %vm1788, %v1831, 0.0
      %v1849 = vadd.f32 %v1847, %v1848
      %v1850 = vsel %vm1788, %v1832, 0.0
      %v1851 = vadd.f32 %v1849, %v1850
      %v1852 = vsel %vm1788, %v1833, 0.0
      %v1853 = vadd.f32 %v1851, %v1852
      %v1854 = vsel %vm1788, %v1834, 0.0
      %v1855 = vadd.f32 %v1853, %v1854
      %v1856 = vsel %vm1788, %v1835, 0.0
      %v1857 = vadd.f32 %v1855, %v1856
      %v1858 = vsel %vm1788, %v1836, 0.0
      %v1859 = vadd.f32 %v1857, %v1858
      %v1860 = vsel %vm1788, %v1837, 0.0
      %v1861 = vadd.f32 %v1859, %v1860
      %v1862 = vsel %vm1788, %v1838, 0.0
      %v1863 = vadd.f32 %v1861, %v1862
      %v1864 = vsel %vm1788, %v1839, 0.0
      %v1865 = vadd.f32 %v1863, %v1864
      %v1866 = vsel %vm1788, %v1840, 0.0
      %v1867 = vadd.f32 %v1865, %v1866
      %v1868 = vsel %vm1788, %v1841, 0.0
      %v1869 = vadd.f32 %v1867, %v1868
      %v1870 = vsel %vm1788, %v1842, 0.0
      %v1871 = vadd.f32 %v1869, %v1870
      %v1872 = vsel %vm1788, %v1843, 0.0
      %v1873 = vadd.f32 %v1871, %v1872
      %v1874 = vsel %vm1788, %v1844, 0.0
      %v1875 = vadd.f32 %v1873, %v1874
      %1876 = vadd.xlane.f32.xlu0 %v1875
      %v1877 = vpop.xlane.xlu0 %1876
      %v1878 = vrot.slane %v1877, 4
      %v1879 = vadd.f32 %v1877, %v1878
      %v1880 = vrot.slane %v1879, 2
      %v1881 = vadd.f32 %v1879, %v1880
      %v1882 = vrot.slane %v1881, 1
      %v1883 = vadd.f32 %v1881, %v1882
      %s1884 = vtos %v1883
      %v1885 = vlaneseq
      %v1886 = vand.u32 %v1885, 127
      %vm1887 = vcmp.eq.s32.totalorder %v1674, 0
      %vm1888 = vcmp.eq.s32.totalorder %v1886, 0
      %vm1889 = vmand %vm1887, %vm1888
      %v1890 = vstv %s1828
      %v1891 = vsel %vm1889, %v1890, 0.0
      %vm1892 = vcmp.eq.s32.totalorder %v1886, 1
      %vm1893 = vmand %vm1887, %vm1892
      %v1894 = vstv %s1884
      %v1895 = vsel %vm1893, %v1894, %v1891
      %1896 = vst [vmem:[%s426] sm:$0xff] %v1895
      %p1897 = scmp.lt.s32.totalorder %s20, 1
      %s1898 = scalar_select %p1897, %s20, 1
      %p1899 = scmp.lt.s32.totalorder %s21, 1
      %s1900 = scalar_select %p1899, %s21, 1
      %s1901 = smul.addr %s1898, 2
      %s1902 = sadd.s32 %s1900, %s1901
      %s1903 = smul.addr %s1902, 8
      %s1904 = scalar_lea.vmem %s5, %s1903
      // Predicated region
      $region41: #{spectral_distance.1} parent=39 // pred_check
        %p1905 = pneg %p189
      $region42: #{spectral_distance.1} parent=39 // pred_check_branch
        %1907 = sbr.rel (%p1905) target = $region44
      $region43: #{spectral_distance.1} parent=39 // pred_region
        _
      $region44: #{spectral_distance.1} parent=39 // pred_fallthru
        _
    $region40: #{spectral_distance.1} parent=5 // pred_fallthru
      _
    %p1908 = scmp.le.s32.totalorder 2, %s11
    // Predicated region
    $region45: #{spectral_distance.1} parent=5 // pred_check
      %p1909 = pneg %p1908
    $region46: #{spectral_distance.1} parent=5 // pred_check_branch
      %1911 = sbr.rel (%p1909) target = $region48
    $region47: #{spectral_distance.1} parent=5 // pred_region
      %s1912 = ssub.s32 %s11, 2
      // Predicated region
      $region49: #{spectral_distance.1} parent=47 // pred_check
        %p1913 = pneg %p195
      $region50: #{spectral_distance.1} parent=47 // pred_check_branch
        %1915 = sbr.rel (%p1913) target = $region52
      $region51: #{spectral_distance.1} parent=47 // pred_region
        %p1916 = scmp.lt.s32.totalorder %s22, 1
        %s1917 = scalar_select %p1916, %s22, 1
        %p1918 = scmp.lt.s32.totalorder %s23, 1
        %s1919 = scalar_select %p1918, %s23, 1
        %s1920 = smul.addr %s1917, 2
        %s1921 = sadd.s32 %s1919, %s1920
        %s1922 = smul.addr %s1921, 8
        %s1923 = scalar_lea.vmem %s5, %s1922
      $region52: #{spectral_distance.1} parent=47 // pred_fallthru
        _
    $region48: #{spectral_distance.1} parent=5 // pred_fallthru
      _
  $region6: #{spectral_distance.1} parent=0 // loop_footer
    %s15 = sadd.s32 1, %s11
  $region7: #{spectral_distance.1} parent=0 // loop_footer_branch
    %10 = sbr.rel target = $region3
  $region8: #{spectral_distance.1} parent=0 // loop_exit
    _

</llo_original>
